<compile_context>
chip_gen: v6e
topology: v6e:2x2x1
jax: 0.10.0
libtpu: 0.0.40
codegen_flags: <defaults>
</compile_context>

<pallas_src>
import jax
import jax.numpy as jnp
import numpy as np
from jax import lax
from jax.experimental import pallas as pl
from jax.experimental.pallas import tpu as pltpu

LAYER_NORM_EPS = 1e-12


def _round_up(x, m):
    return ((x + m - 1) // m) * m


def _make_kernel(num_small, tn, eps, unroll):
    """Kernel: double-buffered HBM row gather of one big table + VMEM-resident
    small tables via one-hot matmul, summed, then LayerNorm."""

    def kernel(*refs):
        big_ids = refs[0]                                   # SMEM  (n_pad,) int32
        big_tab = refs[1]                                   # HBM   (V_big, H)
        small_ids = refs[2:2 + num_small]                   # VMEM  (tn, 1) int32
        small_tabs = refs[2 + num_small:2 + 2 * num_small]  # VMEM  (V_s, H)
        gb_ref = refs[2 + 2 * num_small]                    # VMEM  (2, H)
        out_ref = refs[3 + 2 * num_small]                   # VMEM  (tn, H)
        buf = refs[4 + 2 * num_small]                       # VMEM  (2, tn, H) scratch
        sem = refs[5 + 2 * num_small]                       # DMA sems (2,)

        i = pl.program_id(0)
        num_tiles = pl.num_programs(0)

        def issue_tile(tile_idx, slot):
            base = pl.multiple_of(tile_idx * tn, tn)

            def body(t, carry):
                row = big_ids[base + t]
                pltpu.make_async_copy(
                    big_tab.at[row], buf.at[slot, t], sem.at[slot]).start()
                return carry

            lax.fori_loop(0, tn, body, 0, unroll=unroll)

        # Prime slot 0 with this (first) tile's gather.
        @pl.when(i == 0)
        def _():
            issue_tile(0, 0)

        # Prefetch the NEXT tile's rows into the other slot (ids are already in
        # SMEM via scalar prefetch), overlapping with this tile's compute.
        @pl.when(i + 1 < num_tiles)
        def _():
            issue_tile(i + 1, (i + 1) % 2)

        slot = i % 2
        # ONE wait per tile: descriptor bytes (tn*H*4) equal the sum of the tn
        # issued row copies on this semaphore.
        pltpu.make_async_copy(
            big_tab.at[pl.ds(0, tn)], buf.at[slot], sem.at[slot]).wait()

        acc = buf[slot].astype(jnp.float32)

        # Small (VMEM-resident) tables: one-hot gather on the MXU.
        for s in range(num_small):
            ids_col = small_ids[s][...]                     # (tn, 1) int32
            v = small_tabs[s].shape[0]
            onehot = (ids_col == lax.broadcasted_iota(jnp.int32, (tn, v), 1)
                      ).astype(jnp.float32)
            acc = acc + jnp.dot(onehot, small_tabs[s][...],
                                preferred_element_type=jnp.float32)

        # LayerNorm over the hidden dim (VPU/XLU), f32 accumulate.
        mean = jnp.mean(acc, axis=-1, keepdims=True)
        xc = acc - mean
        var = jnp.mean(xc * xc, axis=-1, keepdims=True)
        inv = lax.rsqrt(var + eps)
        out = xc * inv * gb_ref[0:1, :] + gb_ref[1:2, :]
        # Dropout: identity in eval mode.
        out_ref[...] = out.astype(out_ref.dtype)

    return kernel


def embed_layernorm(gathered_ids, gathered_table, resident, gamma, beta, *,
                    eps=LAYER_NORM_EPS, tn=256, unroll=8, vmem_limit_bytes=None):
    """LayerNorm( big_table[gathered_ids] + sum_s small_table_s[ids_s] ).

    gathered_ids:   int array (any leading shape) indexing `gathered_table`
    gathered_table: (V_big, H) float table, row-gathered from HBM by DMA
    resident:       list of (ids, table) pairs with SMALL tables kept in VMEM
    gamma, beta:    (H,) LayerNorm params
    returns float32 array of shape gathered_ids.shape + (H,)
    """
    lead_shape = gathered_ids.shape
    H = gathered_table.shape[1]
    N = int(np.prod(lead_shape))
    num_small = len(resident)

    # Token-tile size: multiple of 8 sublanes, clamped to (padded) N.
    tn = max(8, min(_round_up(tn, 8), _round_up(N, 8)))
    n_pad = _round_up(N, tn)
    grid = (n_pad // tn,)

    big_table = jnp.asarray(gathered_table, jnp.float32)
    # Keep the (tn, H)-shaped wait descriptor statically in-bounds on the table
    # (only relevant for pathologically small vocabularies).
    if big_table.shape[0] < tn:
        big_table = jnp.pad(big_table, ((0, tn - big_table.shape[0]), (0, 0)))

    def flat_ids(a, vocab):
        # Clipping guards the manual DMA / one-hot against out-of-range indices.
        ids = jnp.clip(jnp.asarray(a, jnp.int32).reshape(N), 0, vocab - 1)
        return jnp.pad(ids, (0, n_pad - N))

    big_ids = flat_ids(gathered_ids, gathered_table.shape[0])

    small_ids, small_tabs = [], []
    for ids, tab in resident:
        tab = jnp.asarray(tab, jnp.float32)
        v_pad = _round_up(tab.shape[0], 8)
        small_tabs.append(jnp.pad(tab, ((0, v_pad - tab.shape[0]), (0, 0))))
        small_ids.append(flat_ids(ids, tab.shape[0]).reshape(n_pad, 1))

    gamma_beta = jnp.stack([jnp.asarray(gamma, jnp.float32),
                            jnp.asarray(beta, jnp.float32)], axis=0)   # (2, H)

    kernel = _make_kernel(num_small, tn, eps, unroll)

    in_specs = (
        # Big table stays in HBM; rows are DMA-gathered in the kernel.
        [pl.BlockSpec(memory_space=pl.ANY)]
        # Per-tile id columns for the resident tables (VMEM).
        + [pl.BlockSpec((tn, 1), lambda i, *_: (i, 0)) for _ in small_ids]
        # Small tables: full-array blocks, constant index map -> VMEM-resident.
        + [pl.BlockSpec(t.shape, lambda i, *_: (0, 0)) for t in small_tabs]
        # Packed gamma/beta.
        + [pl.BlockSpec((2, H), lambda i, *_: (0, 0))])

    grid_spec = pltpu.PrefetchScalarGridSpec(
        num_scalar_prefetch=1,          # big-table ids -> SMEM for DMA addressing
        grid=grid,
        in_specs=in_specs,
        out_specs=pl.BlockSpec((tn, H), lambda i, *_: (i, 0)),
        scratch_shapes=[pltpu.VMEM((2, tn, H), jnp.float32),   # double-buffered rows
                        pltpu.SemaphoreType.DMA((2,))],
    )

    out = pl.pallas_call(
        kernel,
        out_shape=jax.ShapeDtypeStruct((n_pad, H), jnp.float32),
        grid_spec=grid_spec,
        compiler_params=pltpu.CompilerParams(
            # Cross-tile double buffering keys off program_id==0 priming and
            # program_id+1 prefetch, so the axis must run in order on one core.
            dimension_semantics=("arbitrary",),
            vmem_limit_bytes=vmem_limit_bytes,
        ),
    )(big_ids, big_table, *small_ids, *small_tabs, gamma_beta)

    return out[:N].reshape(lead_shape + (H,))


def table_header_embeddings_forward(params,
                                    input_tok, input_tok_type, input_tok_pos,
                                    input_header, input_header_type,
                                    *, tn=256):
    """Pallas implementation of TableHeaderEmbeddings.forward (eval mode)."""
    tok_embeddings = embed_layernorm(
        input_tok, params["word_embeddings"],
        [(input_tok_pos, params["position_embeddings"]),
         (input_tok_type, params["type_embeddings"])],
        params["ln_weight"], params["ln_bias"], tn=tn)

    header_embeddings = embed_layernorm(
        input_header, params["header_embeddings"],
        [(input_header_type, params["type_embeddings"])],
        params["ln_weight"], params["ln_bias"], tn=tn)

    # TODO(synk): training-mode dropout would need pltpu.prng_random_bits in-kernel;
    # eval-mode dropout is identity so it is omitted here.
    return tok_embeddings, header_embeddings


def _reference_forward(params, input_tok, input_tok_type, input_tok_pos,
                       input_header, input_header_type):
    def ln(x):
        mean = jnp.mean(x, axis=-1, keepdims=True)
        var = jnp.mean((x - mean) ** 2, axis=-1, keepdims=True)
        return ((x - mean) / jnp.sqrt(var + LAYER_NORM_EPS)
                * params["ln_weight"] + params["ln_bias"])

    tok = (params["word_embeddings"][input_tok]
           + params["position_embeddings"][input_tok_pos]
           + params["type_embeddings"][input_tok_type])
    hdr = (params["header_embeddings"][input_header]
           + params["type_embeddings"][input_header_type])
    return ln(tok), ln(hdr)


if __name__ == "__main__":
    # Small synthetic config consistent with the module.  H=128 keeps the output
    # block lane-dense (production BERT H=768 is also a multiple of 128).
    vocab_size = 64
    header_vocab_size = 48
    max_position_embeddings = 128
    type_vocab_size = 4
    hidden_size = 128

    batch = 2
    seq_tok = 8
    seq_header = 6

    key = jax.random.PRNGKey(0)
    ks = jax.random.split(key, 10)

    def emb_table(k, v, h, padding_idx=None):
        t = 0.02 * jax.random.normal(k, (v, h), dtype=jnp.float32)
        if padding_idx is not None:
            t = t.at[padding_idx].set(0.0)
        return t

    params = {
        "word_embeddings": emb_table(ks[0], vocab_size, hidden_size, padding_idx=0),
        "header_embeddings": emb_table(ks[1], header_vocab_size, hidden_size, padding_idx=0),
        "position_embeddings": emb_table(ks[2], max_position_embeddings, hidden_size),
        "type_embeddings": emb_table(ks[3], type_vocab_size, hidden_size),
        "ln_weight": jnp.ones((hidden_size,), jnp.float32),
        "ln_bias": jnp.zeros((hidden_size,), jnp.float32),
    }

    input_tok = jax.random.randint(ks[4], (batch, seq_tok), 0, vocab_size, dtype=jnp.int32)
    input_tok_type = jax.random.randint(ks[5], (batch, seq_tok), 0, type_vocab_size, dtype=jnp.int32)
    input_tok_pos = jnp.broadcast_to(jnp.arange(seq_tok, dtype=jnp.int32), (batch, seq_tok))
    input_header = jax.random.randint(ks[6], (batch, seq_header), 0, header_vocab_size, dtype=jnp.int32)
    input_header_type = jax.random.randint(ks[7], (batch, seq_header), 0, type_vocab_size, dtype=jnp.int32)

    # tn=8 at these tiny shapes so both paths run >1 grid tile and exercise the
    # cross-tile double-buffered gather path.
    tok_out, hdr_out = table_header_embeddings_forward(
        params, input_tok, input_tok_type, input_tok_pos,
        input_header, input_header_type, tn=8)
    jax.block_until_ready((tok_out, hdr_out))

    tok_ref, hdr_ref = _reference_forward(
        params, input_tok, input_tok_type, input_tok_pos,
        input_header, input_header_type)

    assert tok_out.shape == (batch, seq_tok, hidden_size)
    assert hdr_out.shape == (batch, seq_header, hidden_size)
    np.testing.assert_allclose(np.asarray(tok_out), np.asarray(tok_ref), atol=1e-5, rtol=1e-5)
    np.testing.assert_allclose(np.asarray(hdr_out), np.asarray(hdr_ref), atol=1e-5, rtol=1e-5)

    print("KERNEL_OK")
</pallas_src>

<mosaic_0001>
module attributes {stable_mosaic.version = 11 : i64} {
  func.func @kernel(%arg0: i32, %arg1: memref<16xi32, #tpu.memory_space<smem>>, %arg2: memref<64x128xf32, #tpu.memory_space<any>>, %arg3: memref<8x1xi32, #tpu.memory_space<vmem>>, %arg4: memref<8x1xi32, #tpu.memory_space<vmem>>, %arg5: memref<128x128xf32, #tpu.memory_space<vmem>>, %arg6: memref<8x128xf32, #tpu.memory_space<vmem>>, %arg7: memref<2x128xf32, #tpu.memory_space<vmem>>, %arg8: memref<8x128xf32, #tpu.memory_space<vmem>>, %arg9: memref<2x8x128xf32, #tpu.memory_space<vmem>>, %arg10: memref<2x!tpu.dma_semaphore, #tpu.memory_space<semaphore_mem>>) attributes {dimension_semantics = [#tpu.dimension_semantics<arbitrary>], iteration_bounds = array<i64: 2>, scalar_prefetch = 1 : i64, scratch_operands = 2 : i64, tpu.core_type = #tpu.core_type<tc>, window_params = [{}, {transform_indices = @transform_1, window_bounds = array<i64: 8, 1>}, {transform_indices = @transform_2, window_bounds = array<i64: 8, 1>}, {pipeline_mode = #tpu.pipeline_mode<synchronous>, transform_indices = @transform_3, window_bounds = array<i64: 128, 128>}, {pipeline_mode = #tpu.pipeline_mode<synchronous>, transform_indices = @transform_4, window_bounds = array<i64: 8, 128>}, {pipeline_mode = #tpu.pipeline_mode<synchronous>, transform_indices = @transform_5, window_bounds = array<i64: 2, 128>}, {transform_indices = @transform_6, window_bounds = array<i64: 8, 128>}]} {
    %c0_i32 = arith.constant 0 : i32
    %0 = arith.cmpi eq, %arg0, %c0_i32 : i32
    %1 = arith.extui %0 : i1 to i32
    %c0_i32_0 = arith.constant 0 : i32
    %2 = arith.cmpi ne, %1, %c0_i32_0 : i32
    scf.if %2 {
      %c0_i32_32 = arith.constant 0 : i32
      %66 = tpu.assume_multiple %c0_i32_32, 8 : i32
      %c0_i32_33 = arith.constant 0 : i32
      %67 = arith.addi %66, %c0_i32_33 : i32
      %68 = arith.index_cast %67 : i32 to index
      %69 = memref.load %arg1[%68] : memref<16xi32, #tpu.memory_space<smem>>
      %c0_i32_34 = arith.constant 0 : i32
      %c0_i32_35 = arith.constant 0 : i32
      %c0_i32_36 = arith.constant 0 : i32
      %70 = tpu.memref_slice %arg2[%69, %c0_i32_36] : memref<64x128xf32, #tpu.memory_space<any>> -> memref<1x128xf32, #tpu.memory_space<any>>
      %71 = tpu.memref_squeeze %70 : memref<1x128xf32, #tpu.memory_space<any>> -> memref<128xf32, #tpu.memory_space<any>>
      %c0_i32_37 = arith.constant 0 : i32
      %72 = tpu.memref_slice %arg9[%c0_i32_34, %c0_i32_33, %c0_i32_37] : memref<2x8x128xf32, #tpu.memory_space<vmem>> -> memref<1x1x128xf32, #tpu.memory_space<vmem>>
      %73 = tpu.memref_squeeze %72 : memref<1x1x128xf32, #tpu.memory_space<vmem>> -> memref<128xf32, #tpu.memory_space<vmem>>
      %74 = tpu.memref_slice %arg10[%c0_i32_35] : memref<2x!tpu.dma_semaphore, #tpu.memory_space<semaphore_mem>> -> memref<1x!tpu.dma_semaphore, #tpu.memory_space<semaphore_mem>>
      %75 = tpu.memref_squeeze %74 : memref<1x!tpu.dma_semaphore, #tpu.memory_space<semaphore_mem>> -> memref<!tpu.dma_semaphore, #tpu.memory_space<semaphore_mem>>
      tpu.enqueue_dma source(%71 : memref<128xf32, #tpu.memory_space<any>>) target(%73 : memref<128xf32, #tpu.memory_space<vmem>>) target_semaphore(%75 : memref<!tpu.dma_semaphore, #tpu.memory_space<semaphore_mem>>)
      %c1_i32_38 = arith.constant 1 : i32
      %76 = arith.addi %66, %c1_i32_38 : i32
      %77 = arith.index_cast %76 : i32 to index
      %78 = memref.load %arg1[%77] : memref<16xi32, #tpu.memory_space<smem>>
      %c0_i32_39 = arith.constant 0 : i32
      %c0_i32_40 = arith.constant 0 : i32
      %c0_i32_41 = arith.constant 0 : i32
      %79 = tpu.memref_slice %arg2[%78, %c0_i32_41] : memref<64x128xf32, #tpu.memory_space<any>> -> memref<1x128xf32, #tpu.memory_space<any>>
      %80 = tpu.memref_squeeze %79 : memref<1x128xf32, #tpu.memory_space<any>> -> memref<128xf32, #tpu.memory_space<any>>
      %c0_i32_42 = arith.constant 0 : i32
      %81 = tpu.memref_slice %arg9[%c0_i32_39, %c1_i32_38, %c0_i32_42] : memref<2x8x128xf32, #tpu.memory_space<vmem>> -> memref<1x1x128xf32, #tpu.memory_space<vmem>>
      %82 = tpu.memref_squeeze %81 : memref<1x1x128xf32, #tpu.memory_space<vmem>> -> memref<128xf32, #tpu.memory_space<vmem>>
      %83 = tpu.memref_slice %arg10[%c0_i32_40] : memref<2x!tpu.dma_semaphore, #tpu.memory_space<semaphore_mem>> -> memref<1x!tpu.dma_semaphore, #tpu.memory_space<semaphore_mem>>
      %84 = tpu.memref_squeeze %83 : memref<1x!tpu.dma_semaphore, #tpu.memory_space<semaphore_mem>> -> memref<!tpu.dma_semaphore, #tpu.memory_space<semaphore_mem>>
      tpu.enqueue_dma source(%80 : memref<128xf32, #tpu.memory_space<any>>) target(%82 : memref<128xf32, #tpu.memory_space<vmem>>) target_semaphore(%84 : memref<!tpu.dma_semaphore, #tpu.memory_space<semaphore_mem>>)
      %c2_i32_43 = arith.constant 2 : i32
      %85 = arith.addi %66, %c2_i32_43 : i32
      %86 = arith.index_cast %85 : i32 to index
      %87 = memref.load %arg1[%86] : memref<16xi32, #tpu.memory_space<smem>>
      %c0_i32_44 = arith.constant 0 : i32
      %c0_i32_45 = arith.constant 0 : i32
      %c0_i32_46 = arith.constant 0 : i32
      %88 = tpu.memref_slice %arg2[%87, %c0_i32_46] : memref<64x128xf32, #tpu.memory_space<any>> -> memref<1x128xf32, #tpu.memory_space<any>>
      %89 = tpu.memref_squeeze %88 : memref<1x128xf32, #tpu.memory_space<any>> -> memref<128xf32, #tpu.memory_space<any>>
      %c0_i32_47 = arith.constant 0 : i32
      %90 = tpu.memref_slice %arg9[%c0_i32_44, %c2_i32_43, %c0_i32_47] : memref<2x8x128xf32, #tpu.memory_space<vmem>> -> memref<1x1x128xf32, #tpu.memory_space<vmem>>
      %91 = tpu.memref_squeeze %90 : memref<1x1x128xf32, #tpu.memory_space<vmem>> -> memref<128xf32, #tpu.memory_space<vmem>>
      %92 = tpu.memref_slice %arg10[%c0_i32_45] : memref<2x!tpu.dma_semaphore, #tpu.memory_space<semaphore_mem>> -> memref<1x!tpu.dma_semaphore, #tpu.memory_space<semaphore_mem>>
      %93 = tpu.memref_squeeze %92 : memref<1x!tpu.dma_semaphore, #tpu.memory_space<semaphore_mem>> -> memref<!tpu.dma_semaphore, #tpu.memory_space<semaphore_mem>>
      tpu.enqueue_dma source(%89 : memref<128xf32, #tpu.memory_space<any>>) target(%91 : memref<128xf32, #tpu.memory_space<vmem>>) target_semaphore(%93 : memref<!tpu.dma_semaphore, #tpu.memory_space<semaphore_mem>>)
      %c3_i32 = arith.constant 3 : i32
      %94 = arith.addi %66, %c3_i32 : i32
      %95 = arith.index_cast %94 : i32 to index
      %96 = memref.load %arg1[%95] : memref<16xi32, #tpu.memory_space<smem>>
      %c0_i32_48 = arith.constant 0 : i32
      %c0_i32_49 = arith.constant 0 : i32
      %c0_i32_50 = arith.constant 0 : i32
      %97 = tpu.memref_slice %arg2[%96, %c0_i32_50] : memref<64x128xf32, #tpu.memory_space<any>> -> memref<1x128xf32, #tpu.memory_space<any>>
      %98 = tpu.memref_squeeze %97 : memref<1x128xf32, #tpu.memory_space<any>> -> memref<128xf32, #tpu.memory_space<any>>
      %c0_i32_51 = arith.constant 0 : i32
      %99 = tpu.memref_slice %arg9[%c0_i32_48, %c3_i32, %c0_i32_51] : memref<2x8x128xf32, #tpu.memory_space<vmem>> -> memref<1x1x128xf32, #tpu.memory_space<vmem>>
      %100 = tpu.memref_squeeze %99 : memref<1x1x128xf32, #tpu.memory_space<vmem>> -> memref<128xf32, #tpu.memory_space<vmem>>
      %101 = tpu.memref_slice %arg10[%c0_i32_49] : memref<2x!tpu.dma_semaphore, #tpu.memory_space<semaphore_mem>> -> memref<1x!tpu.dma_semaphore, #tpu.memory_space<semaphore_mem>>
      %102 = tpu.memref_squeeze %101 : memref<1x!tpu.dma_semaphore, #tpu.memory_space<semaphore_mem>> -> memref<!tpu.dma_semaphore, #tpu.memory_space<semaphore_mem>>
      tpu.enqueue_dma source(%98 : memref<128xf32, #tpu.memory_space<any>>) target(%100 : memref<128xf32, #tpu.memory_space<vmem>>) target_semaphore(%102 : memref<!tpu.dma_semaphore, #tpu.memory_space<semaphore_mem>>)
      %c4_i32 = arith.constant 4 : i32
      %103 = arith.addi %66, %c4_i32 : i32
      %104 = arith.index_cast %103 : i32 to index
      %105 = memref.load %arg1[%104] : memref<16xi32, #tpu.memory_space<smem>>
      %c0_i32_52 = arith.constant 0 : i32
      %c0_i32_53 = arith.constant 0 : i32
      %c0_i32_54 = arith.constant 0 : i32
      %106 = tpu.memref_slice %arg2[%105, %c0_i32_54] : memref<64x128xf32, #tpu.memory_space<any>> -> memref<1x128xf32, #tpu.memory_space<any>>
      %107 = tpu.memref_squeeze %106 : memref<1x128xf32, #tpu.memory_space<any>> -> memref<128xf32, #tpu.memory_space<any>>
      %c0_i32_55 = arith.constant 0 : i32
      %108 = tpu.memref_slice %arg9[%c0_i32_52, %c4_i32, %c0_i32_55] : memref<2x8x128xf32, #tpu.memory_space<vmem>> -> memref<1x1x128xf32, #tpu.memory_space<vmem>>
      %109 = tpu.memref_squeeze %108 : memref<1x1x128xf32, #tpu.memory_space<vmem>> -> memref<128xf32, #tpu.memory_space<vmem>>
      %110 = tpu.memref_slice %arg10[%c0_i32_53] : memref<2x!tpu.dma_semaphore, #tpu.memory_space<semaphore_mem>> -> memref<1x!tpu.dma_semaphore, #tpu.memory_space<semaphore_mem>>
      %111 = tpu.memref_squeeze %110 : memref<1x!tpu.dma_semaphore, #tpu.memory_space<semaphore_mem>> -> memref<!tpu.dma_semaphore, #tpu.memory_space<semaphore_mem>>
      tpu.enqueue_dma source(%107 : memref<128xf32, #tpu.memory_space<any>>) target(%109 : memref<128xf32, #tpu.memory_space<vmem>>) target_semaphore(%111 : memref<!tpu.dma_semaphore, #tpu.memory_space<semaphore_mem>>)
      %c5_i32 = arith.constant 5 : i32
      %112 = arith.addi %66, %c5_i32 : i32
      %113 = arith.index_cast %112 : i32 to index
      %114 = memref.load %arg1[%113] : memref<16xi32, #tpu.memory_space<smem>>
      %c0_i32_56 = arith.constant 0 : i32
      %c0_i32_57 = arith.constant 0 : i32
      %c0_i32_58 = arith.constant 0 : i32
      %115 = tpu.memref_slice %arg2[%114, %c0_i32_58] : memref<64x128xf32, #tpu.memory_space<any>> -> memref<1x128xf32, #tpu.memory_space<any>>
      %116 = tpu.memref_squeeze %115 : memref<1x128xf32, #tpu.memory_space<any>> -> memref<128xf32, #tpu.memory_space<any>>
      %c0_i32_59 = arith.constant 0 : i32
      %117 = tpu.memref_slice %arg9[%c0_i32_56, %c5_i32, %c0_i32_59] : memref<2x8x128xf32, #tpu.memory_space<vmem>> -> memref<1x1x128xf32, #tpu.memory_space<vmem>>
      %118 = tpu.memref_squeeze %117 : memref<1x1x128xf32, #tpu.memory_space<vmem>> -> memref<128xf32, #tpu.memory_space<vmem>>
      %119 = tpu.memref_slice %arg10[%c0_i32_57] : memref<2x!tpu.dma_semaphore, #tpu.memory_space<semaphore_mem>> -> memref<1x!tpu.dma_semaphore, #tpu.memory_space<semaphore_mem>>
      %120 = tpu.memref_squeeze %119 : memref<1x!tpu.dma_semaphore, #tpu.memory_space<semaphore_mem>> -> memref<!tpu.dma_semaphore, #tpu.memory_space<semaphore_mem>>
      tpu.enqueue_dma source(%116 : memref<128xf32, #tpu.memory_space<any>>) target(%118 : memref<128xf32, #tpu.memory_space<vmem>>) target_semaphore(%120 : memref<!tpu.dma_semaphore, #tpu.memory_space<semaphore_mem>>)
      %c6_i32 = arith.constant 6 : i32
      %121 = arith.addi %66, %c6_i32 : i32
      %122 = arith.index_cast %121 : i32 to index
      %123 = memref.load %arg1[%122] : memref<16xi32, #tpu.memory_space<smem>>
      %c0_i32_60 = arith.constant 0 : i32
      %c0_i32_61 = arith.constant 0 : i32
      %c0_i32_62 = arith.constant 0 : i32
      %124 = tpu.memref_slice %arg2[%123, %c0_i32_62] : memref<64x128xf32, #tpu.memory_space<any>> -> memref<1x128xf32, #tpu.memory_space<any>>
      %125 = tpu.memref_squeeze %124 : memref<1x128xf32, #tpu.memory_space<any>> -> memref<128xf32, #tpu.memory_space<any>>
      %c0_i32_63 = arith.constant 0 : i32
      %126 = tpu.memref_slice %arg9[%c0_i32_60, %c6_i32, %c0_i32_63] : memref<2x8x128xf32, #tpu.memory_space<vmem>> -> memref<1x1x128xf32, #tpu.memory_space<vmem>>
      %127 = tpu.memref_squeeze %126 : memref<1x1x128xf32, #tpu.memory_space<vmem>> -> memref<128xf32, #tpu.memory_space<vmem>>
      %128 = tpu.memref_slice %arg10[%c0_i32_61] : memref<2x!tpu.dma_semaphore, #tpu.memory_space<semaphore_mem>> -> memref<1x!tpu.dma_semaphore, #tpu.memory_space<semaphore_mem>>
      %129 = tpu.memref_squeeze %128 : memref<1x!tpu.dma_semaphore, #tpu.memory_space<semaphore_mem>> -> memref<!tpu.dma_semaphore, #tpu.memory_space<semaphore_mem>>
      tpu.enqueue_dma source(%125 : memref<128xf32, #tpu.memory_space<any>>) target(%127 : memref<128xf32, #tpu.memory_space<vmem>>) target_semaphore(%129 : memref<!tpu.dma_semaphore, #tpu.memory_space<semaphore_mem>>)
      %c7_i32 = arith.constant 7 : i32
      %130 = arith.addi %66, %c7_i32 : i32
      %131 = arith.index_cast %130 : i32 to index
      %132 = memref.load %arg1[%131] : memref<16xi32, #tpu.memory_space<smem>>
      %c0_i32_64 = arith.constant 0 : i32
      %c0_i32_65 = arith.constant 0 : i32
      %c0_i32_66 = arith.constant 0 : i32
      %133 = tpu.memref_slice %arg2[%132, %c0_i32_66] : memref<64x128xf32, #tpu.memory_space<any>> -> memref<1x128xf32, #tpu.memory_space<any>>
      %134 = tpu.memref_squeeze %133 : memref<1x128xf32, #tpu.memory_space<any>> -> memref<128xf32, #tpu.memory_space<any>>
      %c0_i32_67 = arith.constant 0 : i32
      %135 = tpu.memref_slice %arg9[%c0_i32_64, %c7_i32, %c0_i32_67] : memref<2x8x128xf32, #tpu.memory_space<vmem>> -> memref<1x1x128xf32, #tpu.memory_space<vmem>>
      %136 = tpu.memref_squeeze %135 : memref<1x1x128xf32, #tpu.memory_space<vmem>> -> memref<128xf32, #tpu.memory_space<vmem>>
      %137 = tpu.memref_slice %arg10[%c0_i32_65] : memref<2x!tpu.dma_semaphore, #tpu.memory_space<semaphore_mem>> -> memref<1x!tpu.dma_semaphore, #tpu.memory_space<semaphore_mem>>
      %138 = tpu.memref_squeeze %137 : memref<1x!tpu.dma_semaphore, #tpu.memory_space<semaphore_mem>> -> memref<!tpu.dma_semaphore, #tpu.memory_space<semaphore_mem>>
      tpu.enqueue_dma source(%134 : memref<128xf32, #tpu.memory_space<any>>) target(%136 : memref<128xf32, #tpu.memory_space<vmem>>) target_semaphore(%138 : memref<!tpu.dma_semaphore, #tpu.memory_space<semaphore_mem>>)
      %c8_i32 = arith.constant 8 : i32
    } else {
    }
    %c1_i32 = arith.constant 1 : i32
    %3 = arith.addi %arg0, %c1_i32 : i32
    %c2_i32 = arith.constant 2 : i32
    %4 = arith.cmpi slt, %3, %c2_i32 : i32
    %5 = arith.extui %4 : i1 to i32
    %c0_i32_1 = arith.constant 0 : i32
    %6 = arith.cmpi ne, %5, %c0_i32_1 : i32
    scf.if %6 {
      %c1_i32_32 = arith.constant 1 : i32
      %66 = arith.addi %arg0, %c1_i32_32 : i32
      %c1_i32_33 = arith.constant 1 : i32
      %67 = arith.addi %arg0, %c1_i32_33 : i32
      %c2_i32_34 = arith.constant 2 : i32
      %c0_i32_35 = arith.constant 0 : i32
      %68 = arith.cmpi eq, %c2_i32_34, %c0_i32_35 : i32
      %c1_i32_36 = arith.constant 1 : i32
      %69 = arith.select %68, %c1_i32_36, %c2_i32_34 : i32
      %70 = arith.remsi %67, %69 : i32
      %c0_i32_37 = arith.constant 0 : i32
      %71 = arith.cmpi ne, %70, %c0_i32_37 : i32
      %c0_i32_38 = arith.constant 0 : i32
      %72 = arith.cmpi slt, %70, %c0_i32_38 : i32
      %c0_i32_39 = arith.constant 0 : i32
      %73 = arith.cmpi slt, %69, %c0_i32_39 : i32
      %74 = arith.xori %72, %73 : i1
      %75 = arith.andi %74, %71 : i1
      %76 = arith.addi %70, %69 : i32
      %77 = arith.select %75, %76, %70 : i32
      %c8_i32 = arith.constant 8 : i32
      %78 = arith.muli %66, %c8_i32 : i32
      %79 = tpu.assume_multiple %78, 8 : i32
      %c0_i32_40 = arith.constant 0 : i32
      %80 = arith.addi %79, %c0_i32_40 : i32
      %81 = arith.index_cast %80 : i32 to index
      %82 = memref.load %arg1[%81] : memref<16xi32, #tpu.memory_space<smem>>
      %c0_i32_41 = arith.constant 0 : i32
      %83 = tpu.memref_slice %arg2[%82, %c0_i32_41] : memref<64x128xf32, #tpu.memory_space<any>> -> memref<1x128xf32, #tpu.memory_space<any>>
      %84 = tpu.memref_squeeze %83 : memref<1x128xf32, #tpu.memory_space<any>> -> memref<128xf32, #tpu.memory_space<any>>
      %c0_i32_42 = arith.constant 0 : i32
      %85 = tpu.memref_slice %arg9[%77, %c0_i32_40, %c0_i32_42] : memref<2x8x128xf32, #tpu.memory_space<vmem>> -> memref<1x1x128xf32, #tpu.memory_space<vmem>>
      %86 = tpu.memref_squeeze %85 : memref<1x1x128xf32, #tpu.memory_space<vmem>> -> memref<128xf32, #tpu.memory_space<vmem>>
      %87 = tpu.memref_slice %arg10[%77] : memref<2x!tpu.dma_semaphore, #tpu.memory_space<semaphore_mem>> -> memref<1x!tpu.dma_semaphore, #tpu.memory_space<semaphore_mem>>
      %88 = tpu.memref_squeeze %87 : memref<1x!tpu.dma_semaphore, #tpu.memory_space<semaphore_mem>> -> memref<!tpu.dma_semaphore, #tpu.memory_space<semaphore_mem>>
      tpu.enqueue_dma source(%84 : memref<128xf32, #tpu.memory_space<any>>) target(%86 : memref<128xf32, #tpu.memory_space<vmem>>) target_semaphore(%88 : memref<!tpu.dma_semaphore, #tpu.memory_space<semaphore_mem>>)
      %c1_i32_43 = arith.constant 1 : i32
      %89 = arith.addi %79, %c1_i32_43 : i32
      %90 = arith.index_cast %89 : i32 to index
      %91 = memref.load %arg1[%90] : memref<16xi32, #tpu.memory_space<smem>>
      %c0_i32_44 = arith.constant 0 : i32
      %92 = tpu.memref_slice %arg2[%91, %c0_i32_44] : memref<64x128xf32, #tpu.memory_space<any>> -> memref<1x128xf32, #tpu.memory_space<any>>
      %93 = tpu.memref_squeeze %92 : memref<1x128xf32, #tpu.memory_space<any>> -> memref<128xf32, #tpu.memory_space<any>>
      %c0_i32_45 = arith.constant 0 : i32
      %94 = tpu.memref_slice %arg9[%77, %c1_i32_43, %c0_i32_45] : memref<2x8x128xf32, #tpu.memory_space<vmem>> -> memref<1x1x128xf32, #tpu.memory_space<vmem>>
      %95 = tpu.memref_squeeze %94 : memref<1x1x128xf32, #tpu.memory_space<vmem>> -> memref<128xf32, #tpu.memory_space<vmem>>
      %96 = tpu.memref_slice %arg10[%77] : memref<2x!tpu.dma_semaphore, #tpu.memory_space<semaphore_mem>> -> memref<1x!tpu.dma_semaphore, #tpu.memory_space<semaphore_mem>>
      %97 = tpu.memref_squeeze %96 : memref<1x!tpu.dma_semaphore, #tpu.memory_space<semaphore_mem>> -> memref<!tpu.dma_semaphore, #tpu.memory_space<semaphore_mem>>
      tpu.enqueue_dma source(%93 : memref<128xf32, #tpu.memory_space<any>>) target(%95 : memref<128xf32, #tpu.memory_space<vmem>>) target_semaphore(%97 : memref<!tpu.dma_semaphore, #tpu.memory_space<semaphore_mem>>)
      %c2_i32_46 = arith.constant 2 : i32
      %98 = arith.addi %79, %c2_i32_46 : i32
      %99 = arith.index_cast %98 : i32 to index
      %100 = memref.load %arg1[%99] : memref<16xi32, #tpu.memory_space<smem>>
      %c0_i32_47 = arith.constant 0 : i32
      %101 = tpu.memref_slice %arg2[%100, %c0_i32_47] : memref<64x128xf32, #tpu.memory_space<any>> -> memref<1x128xf32, #tpu.memory_space<any>>
      %102 = tpu.memref_squeeze %101 : memref<1x128xf32, #tpu.memory_space<any>> -> memref<128xf32, #tpu.memory_space<any>>
      %c0_i32_48 = arith.constant 0 : i32
      %103 = tpu.memref_slice %arg9[%77, %c2_i32_46, %c0_i32_48] : memref<2x8x128xf32, #tpu.memory_space<vmem>> -> memref<1x1x128xf32, #tpu.memory_space<vmem>>
      %104 = tpu.memref_squeeze %103 : memref<1x1x128xf32, #tpu.memory_space<vmem>> -> memref<128xf32, #tpu.memory_space<vmem>>
      %105 = tpu.memref_slice %arg10[%77] : memref<2x!tpu.dma_semaphore, #tpu.memory_space<semaphore_mem>> -> memref<1x!tpu.dma_semaphore, #tpu.memory_space<semaphore_mem>>
      %106 = tpu.memref_squeeze %105 : memref<1x!tpu.dma_semaphore, #tpu.memory_space<semaphore_mem>> -> memref<!tpu.dma_semaphore, #tpu.memory_space<semaphore_mem>>
      tpu.enqueue_dma source(%102 : memref<128xf32, #tpu.memory_space<any>>) target(%104 : memref<128xf32, #tpu.memory_space<vmem>>) target_semaphore(%106 : memref<!tpu.dma_semaphore, #tpu.memory_space<semaphore_mem>>)
      %c3_i32 = arith.constant 3 : i32
      %107 = arith.addi %79, %c3_i32 : i32
      %108 = arith.index_cast %107 : i32 to index
      %109 = memref.load %arg1[%108] : memref<16xi32, #tpu.memory_space<smem>>
      %c0_i32_49 = arith.constant 0 : i32
      %110 = tpu.memref_slice %arg2[%109, %c0_i32_49] : memref<64x128xf32, #tpu.memory_space<any>> -> memref<1x128xf32, #tpu.memory_space<any>>
      %111 = tpu.memref_squeeze %110 : memref<1x128xf32, #tpu.memory_space<any>> -> memref<128xf32, #tpu.memory_space<any>>
      %c0_i32_50 = arith.constant 0 : i32
      %112 = tpu.memref_slice %arg9[%77, %c3_i32, %c0_i32_50] : memref<2x8x128xf32, #tpu.memory_space<vmem>> -> memref<1x1x128xf32, #tpu.memory_space<vmem>>
      %113 = tpu.memref_squeeze %112 : memref<1x1x128xf32, #tpu.memory_space<vmem>> -> memref<128xf32, #tpu.memory_space<vmem>>
      %114 = tpu.memref_slice %arg10[%77] : memref<2x!tpu.dma_semaphore, #tpu.memory_space<semaphore_mem>> -> memref<1x!tpu.dma_semaphore, #tpu.memory_space<semaphore_mem>>
      %115 = tpu.memref_squeeze %114 : memref<1x!tpu.dma_semaphore, #tpu.memory_space<semaphore_mem>> -> memref<!tpu.dma_semaphore, #tpu.memory_space<semaphore_mem>>
      tpu.enqueue_dma source(%111 : memref<128xf32, #tpu.memory_space<any>>) target(%113 : memref<128xf32, #tpu.memory_space<vmem>>) target_semaphore(%115 : memref<!tpu.dma_semaphore, #tpu.memory_space<semaphore_mem>>)
      %c4_i32 = arith.constant 4 : i32
      %116 = arith.addi %79, %c4_i32 : i32
      %117 = arith.index_cast %116 : i32 to index
      %118 = memref.load %arg1[%117] : memref<16xi32, #tpu.memory_space<smem>>
      %c0_i32_51 = arith.constant 0 : i32
      %119 = tpu.memref_slice %arg2[%118, %c0_i32_51] : memref<64x128xf32, #tpu.memory_space<any>> -> memref<1x128xf32, #tpu.memory_space<any>>
      %120 = tpu.memref_squeeze %119 : memref<1x128xf32, #tpu.memory_space<any>> -> memref<128xf32, #tpu.memory_space<any>>
      %c0_i32_52 = arith.constant 0 : i32
      %121 = tpu.memref_slice %arg9[%77, %c4_i32, %c0_i32_52] : memref<2x8x128xf32, #tpu.memory_space<vmem>> -> memref<1x1x128xf32, #tpu.memory_space<vmem>>
      %122 = tpu.memref_squeeze %121 : memref<1x1x128xf32, #tpu.memory_space<vmem>> -> memref<128xf32, #tpu.memory_space<vmem>>
      %123 = tpu.memref_slice %arg10[%77] : memref<2x!tpu.dma_semaphore, #tpu.memory_space<semaphore_mem>> -> memref<1x!tpu.dma_semaphore, #tpu.memory_space<semaphore_mem>>
      %124 = tpu.memref_squeeze %123 : memref<1x!tpu.dma_semaphore, #tpu.memory_space<semaphore_mem>> -> memref<!tpu.dma_semaphore, #tpu.memory_space<semaphore_mem>>
      tpu.enqueue_dma source(%120 : memref<128xf32, #tpu.memory_space<any>>) target(%122 : memref<128xf32, #tpu.memory_space<vmem>>) target_semaphore(%124 : memref<!tpu.dma_semaphore, #tpu.memory_space<semaphore_mem>>)
      %c5_i32 = arith.constant 5 : i32
      %125 = arith.addi %79, %c5_i32 : i32
      %126 = arith.index_cast %125 : i32 to index
      %127 = memref.load %arg1[%126] : memref<16xi32, #tpu.memory_space<smem>>
      %c0_i32_53 = arith.constant 0 : i32
      %128 = tpu.memref_slice %arg2[%127, %c0_i32_53] : memref<64x128xf32, #tpu.memory_space<any>> -> memref<1x128xf32, #tpu.memory_space<any>>
      %129 = tpu.memref_squeeze %128 : memref<1x128xf32, #tpu.memory_space<any>> -> memref<128xf32, #tpu.memory_space<any>>
      %c0_i32_54 = arith.constant 0 : i32
      %130 = tpu.memref_slice %arg9[%77, %c5_i32, %c0_i32_54] : memref<2x8x128xf32, #tpu.memory_space<vmem>> -> memref<1x1x128xf32, #tpu.memory_space<vmem>>
      %131 = tpu.memref_squeeze %130 : memref<1x1x128xf32, #tpu.memory_space<vmem>> -> memref<128xf32, #tpu.memory_space<vmem>>
      %132 = tpu.memref_slice %arg10[%77] : memref<2x!tpu.dma_semaphore, #tpu.memory_space<semaphore_mem>> -> memref<1x!tpu.dma_semaphore, #tpu.memory_space<semaphore_mem>>
      %133 = tpu.memref_squeeze %132 : memref<1x!tpu.dma_semaphore, #tpu.memory_space<semaphore_mem>> -> memref<!tpu.dma_semaphore, #tpu.memory_space<semaphore_mem>>
      tpu.enqueue_dma source(%129 : memref<128xf32, #tpu.memory_space<any>>) target(%131 : memref<128xf32, #tpu.memory_space<vmem>>) target_semaphore(%133 : memref<!tpu.dma_semaphore, #tpu.memory_space<semaphore_mem>>)
      %c6_i32 = arith.constant 6 : i32
      %134 = arith.addi %79, %c6_i32 : i32
      %135 = arith.index_cast %134 : i32 to index
      %136 = memref.load %arg1[%135] : memref<16xi32, #tpu.memory_space<smem>>
      %c0_i32_55 = arith.constant 0 : i32
      %137 = tpu.memref_slice %arg2[%136, %c0_i32_55] : memref<64x128xf32, #tpu.memory_space<any>> -> memref<1x128xf32, #tpu.memory_space<any>>
      %138 = tpu.memref_squeeze %137 : memref<1x128xf32, #tpu.memory_space<any>> -> memref<128xf32, #tpu.memory_space<any>>
      %c0_i32_56 = arith.constant 0 : i32
      %139 = tpu.memref_slice %arg9[%77, %c6_i32, %c0_i32_56] : memref<2x8x128xf32, #tpu.memory_space<vmem>> -> memref<1x1x128xf32, #tpu.memory_space<vmem>>
      %140 = tpu.memref_squeeze %139 : memref<1x1x128xf32, #tpu.memory_space<vmem>> -> memref<128xf32, #tpu.memory_space<vmem>>
      %141 = tpu.memref_slice %arg10[%77] : memref<2x!tpu.dma_semaphore, #tpu.memory_space<semaphore_mem>> -> memref<1x!tpu.dma_semaphore, #tpu.memory_space<semaphore_mem>>
      %142 = tpu.memref_squeeze %141 : memref<1x!tpu.dma_semaphore, #tpu.memory_space<semaphore_mem>> -> memref<!tpu.dma_semaphore, #tpu.memory_space<semaphore_mem>>
      tpu.enqueue_dma source(%138 : memref<128xf32, #tpu.memory_space<any>>) target(%140 : memref<128xf32, #tpu.memory_space<vmem>>) target_semaphore(%142 : memref<!tpu.dma_semaphore, #tpu.memory_space<semaphore_mem>>)
      %c7_i32 = arith.constant 7 : i32
      %143 = arith.addi %79, %c7_i32 : i32
      %144 = arith.index_cast %143 : i32 to index
      %145 = memref.load %arg1[%144] : memref<16xi32, #tpu.memory_space<smem>>
      %c0_i32_57 = arith.constant 0 : i32
      %146 = tpu.memref_slice %arg2[%145, %c0_i32_57] : memref<64x128xf32, #tpu.memory_space<any>> -> memref<1x128xf32, #tpu.memory_space<any>>
      %147 = tpu.memref_squeeze %146 : memref<1x128xf32, #tpu.memory_space<any>> -> memref<128xf32, #tpu.memory_space<any>>
      %c0_i32_58 = arith.constant 0 : i32
      %148 = tpu.memref_slice %arg9[%77, %c7_i32, %c0_i32_58] : memref<2x8x128xf32, #tpu.memory_space<vmem>> -> memref<1x1x128xf32, #tpu.memory_space<vmem>>
      %149 = tpu.memref_squeeze %148 : memref<1x1x128xf32, #tpu.memory_space<vmem>> -> memref<128xf32, #tpu.memory_space<vmem>>
      %150 = tpu.memref_slice %arg10[%77] : memref<2x!tpu.dma_semaphore, #tpu.memory_space<semaphore_mem>> -> memref<1x!tpu.dma_semaphore, #tpu.memory_space<semaphore_mem>>
      %151 = tpu.memref_squeeze %150 : memref<1x!tpu.dma_semaphore, #tpu.memory_space<semaphore_mem>> -> memref<!tpu.dma_semaphore, #tpu.memory_space<semaphore_mem>>
      tpu.enqueue_dma source(%147 : memref<128xf32, #tpu.memory_space<any>>) target(%149 : memref<128xf32, #tpu.memory_space<vmem>>) target_semaphore(%151 : memref<!tpu.dma_semaphore, #tpu.memory_space<semaphore_mem>>)
      %c8_i32_59 = arith.constant 8 : i32
    } else {
    }
    %c2_i32_2 = arith.constant 2 : i32
    %c0_i32_3 = arith.constant 0 : i32
    %7 = arith.cmpi eq, %c2_i32_2, %c0_i32_3 : i32
    %c1_i32_4 = arith.constant 1 : i32
    %8 = arith.select %7, %c1_i32_4, %c2_i32_2 : i32
    %9 = arith.remsi %arg0, %8 : i32
    %c0_i32_5 = arith.constant 0 : i32
    %10 = arith.cmpi ne, %9, %c0_i32_5 : i32
    %c0_i32_6 = arith.constant 0 : i32
    %11 = arith.cmpi slt, %9, %c0_i32_6 : i32
    %c0_i32_7 = arith.constant 0 : i32
    %12 = arith.cmpi slt, %8, %c0_i32_7 : i32
    %13 = arith.xori %11, %12 : i1
    %14 = arith.andi %13, %10 : i1
    %15 = arith.addi %9, %8 : i32
    %16 = arith.select %14, %15, %9 : i32
    %c0_i32_8 = arith.constant 0 : i32
    %c0_i32_9 = arith.constant 0 : i32
    %17 = tpu.memref_slice %arg2[%c0_i32_8, %c0_i32_9] : memref<64x128xf32, #tpu.memory_space<any>> -> memref<8x128xf32, #tpu.memory_space<any>>
    %c0_i32_10 = arith.constant 0 : i32
    %c0_i32_11 = arith.constant 0 : i32
    %18 = tpu.memref_slice %arg9[%16, %c0_i32_10, %c0_i32_11] : memref<2x8x128xf32, #tpu.memory_space<vmem>> -> memref<1x8x128xf32, #tpu.memory_space<vmem>>
    %19 = tpu.memref_squeeze %18 : memref<1x8x128xf32, #tpu.memory_space<vmem>> -> memref<8x128xf32, #tpu.memory_space<vmem>>
    %20 = tpu.memref_slice %arg10[%16] : memref<2x!tpu.dma_semaphore, #tpu.memory_space<semaphore_mem>> -> memref<1x!tpu.dma_semaphore, #tpu.memory_space<semaphore_mem>>
    %21 = tpu.memref_squeeze %20 : memref<1x!tpu.dma_semaphore, #tpu.memory_space<semaphore_mem>> -> memref<!tpu.dma_semaphore, #tpu.memory_space<semaphore_mem>>
    tpu.wait_dma2 semaphore(%21 : memref<!tpu.dma_semaphore, #tpu.memory_space<semaphore_mem>>) src(%17 : memref<8x128xf32, #tpu.memory_space<any>>) dst(%19 : memref<8x128xf32, #tpu.memory_space<vmem>>)
    %22 = arith.index_cast %16 : i32 to index
    %c0 = arith.constant 0 : index
    %c0_12 = arith.constant 0 : index
    %23 = vector.load %arg9[%22, %c0, %c0_12] : memref<2x8x128xf32, #tpu.memory_space<vmem>>, vector<1x8x128xf32>
    %24 = vector.shape_cast %23 : vector<1x8x128xf32> to vector<8x128xf32>
    %c0_13 = arith.constant 0 : index
    %c0_14 = arith.constant 0 : index
    %25 = vector.load %arg3[%c0_13, %c0_14] : memref<8x1xi32, #tpu.memory_space<vmem>>, vector<8x1xi32>
    %26 = tpu.iota {dimensions = array<i32: 1>} : vector<8x128xi32>
    %27 = vector.broadcast %25 : vector<8x1xi32> to vector<8x128xi32>
    %28 = arith.cmpi eq, %27, %26 : vector<8x128xi32>
    %29 = arith.extui %28 : vector<8x128xi1> to vector<8x128xi32>
    %30 = arith.sitofp %29 : vector<8x128xi32> to vector<8x128xf32>
    %c0_15 = arith.constant 0 : index
    %c0_16 = arith.constant 0 : index
    %31 = vector.load %arg5[%c0_15, %c0_16] : memref<128x128xf32, #tpu.memory_space<vmem>>, vector<128x128xf32>
    %cst = arith.constant dense<0.000000e+00> : vector<8x128xf32>
    %32 = tpu.matmul %30, %31, %cst {dimension_numbers = #tpu.dot_dimension_numbers<[1], [0], [0], [1], [0, 0, 1, 1], [], []>} : vector<8x128xf32>, vector<128x128xf32>, vector<8x128xf32> -> vector<8x128xf32>
    %33 = arith.addf %24, %32 : vector<8x128xf32>
    %c0_17 = arith.constant 0 : index
    %c0_18 = arith.constant 0 : index
    %34 = vector.load %arg4[%c0_17, %c0_18] : memref<8x1xi32, #tpu.memory_space<vmem>>, vector<8x1xi32>
    %35 = tpu.iota {dimensions = array<i32: 1>} : vector<8x8xi32>
    %36 = vector.broadcast %34 : vector<8x1xi32> to vector<8x8xi32>
    %37 = arith.cmpi eq, %36, %35 : vector<8x8xi32>
    %38 = arith.extui %37 : vector<8x8xi1> to vector<8x8xi32>
    %39 = arith.sitofp %38 : vector<8x8xi32> to vector<8x8xf32>
    %c0_19 = arith.constant 0 : index
    %c0_20 = arith.constant 0 : index
    %40 = vector.load %arg6[%c0_19, %c0_20] : memref<8x128xf32, #tpu.memory_space<vmem>>, vector<8x128xf32>
    %cst_21 = arith.constant dense<0.000000e+00> : vector<8x128xf32>
    %41 = tpu.matmul %39, %40, %cst_21 {dimension_numbers = #tpu.dot_dimension_numbers<[1], [0], [0], [1], [0, 0, 1, 1], [], []>} : vector<8x8xf32>, vector<8x128xf32>, vector<8x128xf32> -> vector<8x128xf32>
    %42 = arith.addf %33, %41 : vector<8x128xf32>
    %cst_22 = arith.constant dense<0.000000e+00> : vector<8xf32>
    %43 = vector.multi_reduction <add>, %42, %cst_22 [1] : vector<8x128xf32> to vector<8xf32>
    %44 = vector.shape_cast %43 : vector<8xf32> to vector<8x1xf32>
    %cst_23 = arith.constant 1.280000e+02 : f32
    %45 = vector.broadcast %cst_23 : f32 to vector<8x1xf32>
    %46 = arith.divf %44, %45 : vector<8x1xf32>
    %47 = vector.broadcast %46 : vector<8x1xf32> to vector<8x128xf32>
    %48 = arith.subf %42, %47 : vector<8x128xf32>
    %49 = arith.mulf %48, %48 : vector<8x128xf32>
    %cst_24 = arith.constant dense<0.000000e+00> : vector<8xf32>
    %50 = vector.multi_reduction <add>, %49, %cst_24 [1] : vector<8x128xf32> to vector<8xf32>
    %51 = vector.shape_cast %50 : vector<8xf32> to vector<8x1xf32>
    %cst_25 = arith.constant 1.280000e+02 : f32
    %52 = vector.broadcast %cst_25 : f32 to vector<8x1xf32>
    %53 = arith.divf %51, %52 : vector<8x1xf32>
    %cst_26 = arith.constant 9.99999996E-13 : f32
    %54 = vector.broadcast %cst_26 : f32 to vector<8x1xf32>
    %55 = arith.addf %53, %54 : vector<8x1xf32>
    %56 = math.rsqrt %55 : vector<8x1xf32>
    %57 = vector.broadcast %56 : vector<8x1xf32> to vector<8x128xf32>
    %58 = arith.mulf %48, %57 : vector<8x128xf32>
    %c0_27 = arith.constant 0 : index
    %c0_28 = arith.constant 0 : index
    %59 = vector.load %arg7[%c0_27, %c0_28] : memref<2x128xf32, #tpu.memory_space<vmem>>, vector<1x128xf32>
    %60 = vector.broadcast %59 : vector<1x128xf32> to vector<8x128xf32>
    %61 = arith.mulf %58, %60 : vector<8x128xf32>
    %c1 = arith.constant 1 : index
    %c0_29 = arith.constant 0 : index
    %62 = vector.load %arg7[%c1, %c0_29] : memref<2x128xf32, #tpu.memory_space<vmem>>, vector<1x128xf32>
    %63 = vector.broadcast %62 : vector<1x128xf32> to vector<8x128xf32>
    %64 = arith.addf %61, %63 : vector<8x128xf32>
    %c0_30 = arith.constant 0 : index
    %c0_31 = arith.constant 0 : index
    %65 = vector.load %arg8[%c0_30, %c0_31] : memref<8x128xf32, #tpu.memory_space<vmem>>, vector<8x128xf32>
    tpu.vector_store %arg8[%c0_30, %c0_31], %64 {strides = array<i32>} : memref<8x128xf32, #tpu.memory_space<vmem>>, vector<8x128xf32>,
    return
  }
  func.func @transform_1(%arg0: i32, %arg1: memref<16xi32, #tpu.memory_space<smem>>) -> (i32, i32) {
    %c0_i32 = arith.constant 0 : i32
    %c0_i32_0 = arith.constant 0 : i32
    return %arg0, %c0_i32 : i32, i32
  }
  func.func @transform_2(%arg0: i32, %arg1: memref<16xi32, #tpu.memory_space<smem>>) -> (i32, i32) {
    %c0_i32 = arith.constant 0 : i32
    %c0_i32_0 = arith.constant 0 : i32
    return %arg0, %c0_i32 : i32, i32
  }
  func.func @transform_3(%arg0: i32, %arg1: memref<16xi32, #tpu.memory_space<smem>>) -> (i32, i32) {
    %c0_i32 = arith.constant 0 : i32
    %c0_i32_0 = arith.constant 0 : i32
    %c0_i32_1 = arith.constant 0 : i32
    return %c0_i32, %c0_i32_0 : i32, i32
  }
  func.func @transform_4(%arg0: i32, %arg1: memref<16xi32, #tpu.memory_space<smem>>) -> (i32, i32) {
    %c0_i32 = arith.constant 0 : i32
    %c0_i32_0 = arith.constant 0 : i32
    %c0_i32_1 = arith.constant 0 : i32
    return %c0_i32, %c0_i32_0 : i32, i32
  }
  func.func @transform_5(%arg0: i32, %arg1: memref<16xi32, #tpu.memory_space<smem>>) -> (i32, i32) {
    %c0_i32 = arith.constant 0 : i32
    %c0_i32_0 = arith.constant 0 : i32
    %c0_i32_1 = arith.constant 0 : i32
    return %c0_i32, %c0_i32_0 : i32, i32
  }
  func.func @transform_6(%arg0: i32, %arg1: memref<16xi32, #tpu.memory_space<smem>>) -> (i32, i32) {
    %c0_i32 = arith.constant 0 : i32
    %c0_i32_0 = arith.constant 0 : i32
    return %arg0, %c0_i32 : i32, i32
  }
}

</mosaic_0001>

<llo_original>
// kernel: tpu_custom_call.1
$region0: #{tpu_custom_call.1}
  #allocation0 [shape = 'u32[]', space=smem, size = 0x4, offset = 0x4, fixed_abs, tag = 'smem constant byte address 0x4 - core index']
  #allocation1 [shape = 'u32[144,128]{1,0:T(1,128)}', space=vmem, size = 0x12000, scoped, tag = 'internal scratch']
  #allocation2 [shape = 'f32[2,8,128]{2,1,0:T(8,128)}', space=vmem, size = 0x2000, scoped, tag = 'scratch operand']
  #allocation3 [shape = 's32[2]{0}', space=sflag, size = 0x8, scoped, tag = 'scratch operand']
  #allocation4 [shape = 's32[1]{0}', space=sflag, size = 0x4, scoped, tag = 'scoped memory for tpu_custom_call.1']
  #allocation5 [shape = 'u8[512]{0}', space=smem, size = 0x200, scoped, tag = 'prefetched SMEM operand 0']
  #allocation10 [shape = 's32[]', space=sflag, size = 0x4, offset = 0, fixed_abs, tag = 'sflag constant byte address 0x0 - dummy sync flag']
  #allocation11 [shape = 's32[]', space=sflag, size = 0x4, offset = 0, fixed_abs, tag = 'sflag constant byte address 0x0 - dummy sync flag']
  #allocation12 [shape = 'u32[]', space=smem, size = 0x4, offset = 0x44, fixed_abs, tag = 'smem constant byte address 0x44 - assertion arg 0']
  #allocation13 [shape = 'u32[]', space=smem, size = 0x4, offset = 0x48, fixed_abs, tag = 'smem constant byte address 0x48 - assertion arg 1']
  #allocation14 [shape = 's32[]', space=sflag, size = 0x4, offset = 0, fixed_abs, tag = 'sflag constant byte address 0x0 - dummy sync flag']
  #allocation15 [shape = 's32[]', space=sflag, size = 0x4, offset = 0, fixed_abs, tag = 'sflag constant byte address 0x0 - dummy sync flag']
  #allocation16 [shape = 's32[]', space=sflag, size = 0x4, offset = 0, fixed_abs, tag = 'sflag constant byte address 0x0 - dummy sync flag']
  #allocation17 [shape = 's32[]', space=sflag, size = 0x4, offset = 0, fixed_abs, tag = 'sflag constant byte address 0x0 - dummy sync flag']
  #allocation18 [shape = 's32[]', space=sflag, size = 0x4, offset = 0, fixed_abs, tag = 'sflag constant byte address 0x0 - dummy sync flag']
  #allocation19 [shape = 's32[]', space=sflag, size = 0x4, offset = 0, fixed_abs, tag = 'sflag constant byte address 0x0 - dummy sync flag']
  #allocation20 [shape = 's32[]', space=sflag, size = 0x4, offset = 0, fixed_abs, tag = 'sflag constant byte address 0x0 - dummy sync flag']
  #allocation21 [shape = 's32[]', space=sflag, size = 0x4, offset = 0, fixed_abs, tag = 'sflag constant byte address 0x0 - dummy sync flag']
  #allocation22 [shape = 's32[]', space=sflag, size = 0x4, offset = 0, fixed_abs, tag = 'sflag constant byte address 0x0 - dummy sync flag']
  #allocation23 [shape = 's32[]', space=sflag, size = 0x4, offset = 0, fixed_abs, tag = 'sflag constant byte address 0x0 - dummy sync flag']
  #allocation24 [shape = 's32[]', space=sflag, size = 0x4, offset = 0, fixed_abs, tag = 'sflag constant byte address 0x0 - dummy sync flag']
  #allocation25 [shape = 's32[]', space=sflag, size = 0x4, offset = 0, fixed_abs, tag = 'sflag constant byte address 0x0 - dummy sync flag']
  #allocation26 [shape = 's32[]', space=sflag, size = 0x4, offset = 0, fixed_abs, tag = 'sflag constant byte address 0x0 - dummy sync flag']
  #allocation27 [shape = 's32[]', space=sflag, size = 0x4, offset = 0, fixed_abs, tag = 'sflag constant byte address 0x0 - dummy sync flag']
  #allocation28 [shape = 's32[]', space=sflag, size = 0x4, offset = 0, fixed_abs, tag = 'sflag constant byte address 0x0 - dummy sync flag']
  #allocation29 [shape = 's32[]', space=sflag, size = 0x4, offset = 0, fixed_abs, tag = 'sflag constant byte address 0x0 - dummy sync flag']
  #allocation30 [shape = 's32[]', space=sflag, size = 0x4, offset = 0, fixed_abs, tag = 'sflag constant byte address 0x0 - dummy sync flag']
  #allocation31 [shape = 's32[]', space=sflag, size = 0x4, offset = 0, fixed_abs, tag = 'sflag constant byte address 0x0 - dummy sync flag']
  #allocation32 [shape = 's32[]', space=sflag, size = 0x4, offset = 0, fixed_abs, tag = 'sflag constant byte address 0x0 - dummy sync flag']
  #allocation33 [shape = 's32[]', space=sflag, size = 0x4, offset = 0, fixed_abs, tag = 'sflag constant byte address 0x0 - dummy sync flag']
  #allocation34 [shape = 's32[]', space=sflag, size = 0x4, offset = 0, fixed_abs, tag = 'sflag constant byte address 0x0 - dummy sync flag']
  #allocation35 [shape = 's32[]', space=sflag, size = 0x4, offset = 0, fixed_abs, tag = 'sflag constant byte address 0x0 - dummy sync flag']
  #allocation36 [shape = 's32[]', space=sflag, size = 0x4, offset = 0, fixed_abs, tag = 'sflag constant byte address 0x0 - dummy sync flag']
  #allocation37 [shape = 's32[]', space=sflag, size = 0x4, offset = 0, fixed_abs, tag = 'sflag constant byte address 0x0 - dummy sync flag']
  #allocation38 [shape = 's32[]', space=sflag, size = 0x4, offset = 0, fixed_abs, tag = 'sflag constant byte address 0x0 - dummy sync flag']
  #allocation39 [shape = 's32[]', space=sflag, size = 0x4, offset = 0, fixed_abs, tag = 'sflag constant byte address 0x0 - dummy sync flag']
  #allocation40 [shape = 's32[]', space=sflag, size = 0x4, offset = 0, fixed_abs, tag = 'sflag constant byte address 0x0 - dummy sync flag']
  #allocation41 [shape = 's32[]', space=sflag, size = 0x4, offset = 0, fixed_abs, tag = 'sflag constant byte address 0x0 - dummy sync flag']
  #allocation42 [shape = 's32[]', space=sflag, size = 0x4, offset = 0, fixed_abs, tag = 'sflag constant byte address 0x0 - dummy sync flag']
  #allocation43 [shape = 's32[]', space=sflag, size = 0x4, offset = 0, fixed_abs, tag = 'sflag constant byte address 0x0 - dummy sync flag']
  %s0 = inlined_call_operand.vmem [shape: s32[16], index: 0, kind: input, shape index: {}]
  %s1 = inlined_call_operand.hbm [shape: f32[64,128], index: 1, kind: input, shape index: {}]
  %s2 = inlined_call_operand.vmem [shape: s32[16,1], index: 2, kind: input, shape index: {}]
  %s3 = inlined_call_operand.vmem [shape: s32[16,1], index: 3, kind: input, shape index: {}]
  %s4 = inlined_call_operand.hbm [shape: f32[128,128], index: 4, kind: input, shape index: {}]
  %s5 = inlined_call_operand.vmem [shape: f32[8,128], index: 5, kind: input, shape index: {}]
  %s6 = inlined_call_operand.vmem [shape: f32[2,128], index: 6, kind: input, shape index: {}]
  %s7 = inlined_call_operand.hbm [shape: f32[16,128], index: 7, kind: output, shape index: {}]
  %s8 = sld [smem:[#allocation0]]
  $region129: #{tpu_custom_call.1} parent=0
    _
  %s10 = ssub.s32 1, %s8
  %s11 = scalar_select 0, %s10, %s8
  %s12 = sshll.u32 %s0, 4
  %s13 = int_to_ptr.vmem [resolvable:$true] %s12
  %15 = dma.vmem_to_smem %s13, 16, [#allocation5], [#allocation4]
  %16 = dma.done [#allocation4], 16
  %17 = sfence
  $region1: #{tpu_custom_call.1} parent=0
    #allocation6 [shape = 'u8[65536]{0}', space=vmem, size = 0x10000, scoped, tag = 'input window, operand 4, single buffered']
    #allocation7 [shape = 's32[2]{0}', space=sflag, size = 0x8, scoped, tag = 'scoped memory for tpu_custom_call.1']
    #allocation8 [shape = 's32[2]{0}', space=sflag, size = 0x8, scoped, tag = 'scoped memory for tpu_custom_call.1']
    #allocation9 [shape = 'u8[8192]{0}', space=vmem, size = 0x2000, scoped, tag = 'output window, operand 0']
    %18 = vsyncpa [#allocation7], 0
    %19 = vsyncpa [#allocation8], 0
    %s20 = scalar_lea.sflag [#allocation8], 1
    %21 = vsyncpa %s20, 0
    loop: start=0, step=1, limit=4
    $region2: #{tpu_custom_call.1} parent=1 // loop_pre_header
      _
    $region3: #{tpu_custom_call.1} parent=1 // loop_header
      %s23 = sphi 0, %s27
      %p24 = scmp.ge.s32.totalorder %s23, 4
      %s33 = sphi 0, %s35
      %s36 = sphi 0, %s33
      %s37 = sphi 0, %s36
      %s53 = sphi 0, %s37
      %s59 = sphi 0, %s61
      %s62 = sphi 0, %s59
      %s63 = sphi 0, %s62
      %s79 = sphi 0, %s63
      %s83 = sphi 0, %s83
      %s85 = sphi 0, %s83
      %s86 = sphi 0, %s85
      %s100 = sphi 0, %s86
      %s104 = sphi 0, %s104
      %s106 = sphi 0, %s104
      %s107 = sphi 0, %s106
      %s121 = sphi 0, %s107
      %s125 = sphi 0, %s125
      %s127 = sphi 0, %s125
      %s128 = sphi 0, %s127
      %s142 = sphi 0, %s128
      %s148 = sphi 0, %s150
      %s151 = sphi 0, %s148
      %s152 = sphi 0, %s151
      %s168 = sphi 0, %s152
    $region4: #{tpu_custom_call.1} parent=1 // loop_header_branch
      %26 = sbr.rel (%p24) target = $region8
    $region5: #{tpu_custom_call.1} parent=1 // loop_body
      %s28 = ssub.s32 %s23, 1
      %s29 = ssub.s32 %s23, 2
      %s30 = sadd.s32 %s23, 1
      %s31 = ssub.s32 %s23, %s30
      %p32 = scmp.eq.s32.totalorder %s31, 0
      %s34 = sadd.s32 %s33, 1
      %s35 = scalar_select %p32, %s33, %s34
      %p38 = pneg %p32
      %p39 = scmp.eq.s32.totalorder %s23, 1
      %p40 = por %p38, %p39
      %p41 = scmp.ne.s32.totalorder %s33, %s36
      %p42 = scmp.eq.s32.totalorder %s23, 0
      %p43 = por %p41, %p42
      %p44 = scmp.ne.s32.totalorder %s33, %s36
      %p45 = scmp.eq.s32.totalorder %s28, 1
      %p46 = por %p44, %p45
      %p47 = scmp.ne.s32.totalorder %s36, %s37
      %p48 = scmp.eq.s32.totalorder %s28, 0
      %p49 = por %p47, %p48
      %p50 = scmp.ne.s32.totalorder %s36, %s37
      %p51 = scmp.eq.s32.totalorder %s29, 1
      %p52 = por %p50, %p51
      %p54 = scmp.ne.s32.totalorder %s37, %s53
      %p55 = scmp.eq.s32.totalorder %s29, 0
      %p56 = por %p54, %p55
      %s57 = ssub.s32 %s23, %s30
      %p58 = scmp.eq.s32.totalorder %s57, 0
      %s60 = sadd.s32 %s59, 1
      %s61 = scalar_select %p58, %s59, %s60
      %p64 = pneg %p58
      %p65 = scmp.eq.s32.totalorder %s23, 1
      %p66 = por %p64, %p65
      %p67 = scmp.ne.s32.totalorder %s59, %s62
      %p68 = scmp.eq.s32.totalorder %s23, 0
      %p69 = por %p67, %p68
      %p70 = scmp.ne.s32.totalorder %s59, %s62
      %p71 = scmp.eq.s32.totalorder %s28, 1
      %p72 = por %p70, %p71
      %p73 = scmp.ne.s32.totalorder %s62, %s63
      %p74 = scmp.eq.s32.totalorder %s28, 0
      %p75 = por %p73, %p74
      %p76 = scmp.ne.s32.totalorder %s62, %s63
      %p77 = scmp.eq.s32.totalorder %s29, 1
      %p78 = por %p76, %p77
      %p80 = scmp.ne.s32.totalorder %s63, %s79
      %p81 = scmp.eq.s32.totalorder %s29, 0
      %p82 = por %p80, %p81
      %s84 = sadd.s32 %s83, 1
      %p87 = scmp.eq.s32.totalorder %s23, 1
      %p88 = scmp.ne.s32.totalorder %s83, %s85
      %p89 = scmp.eq.s32.totalorder %s23, 0
      %p90 = por %p88, %p89
      %p91 = scmp.ne.s32.totalorder %s83, %s85
      %p92 = scmp.eq.s32.totalorder %s28, 1
      %p93 = por %p91, %p92
      %p94 = scmp.ne.s32.totalorder %s85, %s86
      %p95 = scmp.eq.s32.totalorder %s28, 0
      %p96 = por %p94, %p95
      %p97 = scmp.ne.s32.totalorder %s85, %s86
      %p98 = scmp.eq.s32.totalorder %s29, 1
      %p99 = por %p97, %p98
      %p101 = scmp.ne.s32.totalorder %s86, %s100
      %p102 = scmp.eq.s32.totalorder %s29, 0
      %p103 = por %p101, %p102
      %s105 = sadd.s32 %s104, 1
      %p108 = scmp.eq.s32.totalorder %s23, 1
      %p109 = scmp.ne.s32.totalorder %s104, %s106
      %p110 = scmp.eq.s32.totalorder %s23, 0
      %p111 = por %p109, %p110
      %p112 = scmp.ne.s32.totalorder %s104, %s106
      %p113 = scmp.eq.s32.totalorder %s28, 1
      %p114 = por %p112, %p113
      %p115 = scmp.ne.s32.totalorder %s106, %s107
      %p116 = scmp.eq.s32.totalorder %s28, 0
      %p117 = por %p115, %p116
      %p118 = scmp.ne.s32.totalorder %s106, %s107
      %p119 = scmp.eq.s32.totalorder %s29, 1
      %p120 = por %p118, %p119
      %p122 = scmp.ne.s32.totalorder %s107, %s121
      %p123 = scmp.eq.s32.totalorder %s29, 0
      %p124 = por %p122, %p123
      %s126 = sadd.s32 %s125, 1
      %p129 = scmp.eq.s32.totalorder %s23, 1
      %p130 = scmp.ne.s32.totalorder %s125, %s127
      %p131 = scmp.eq.s32.totalorder %s23, 0
      %p132 = por %p130, %p131
      %p133 = scmp.ne.s32.totalorder %s125, %s127
      %p134 = scmp.eq.s32.totalorder %s28, 1
      %p135 = por %p133, %p134
      %p136 = scmp.ne.s32.totalorder %s127, %s128
      %p137 = scmp.eq.s32.totalorder %s28, 0
      %p138 = por %p136, %p137
      %p139 = scmp.ne.s32.totalorder %s127, %s128
      %p140 = scmp.eq.s32.totalorder %s29, 1
      %p141 = por %p139, %p140
      %p143 = scmp.ne.s32.totalorder %s128, %s142
      %p144 = scmp.eq.s32.totalorder %s29, 0
      %p145 = por %p143, %p144
      %s146 = ssub.s32 %s23, %s30
      %p147 = scmp.eq.s32.totalorder %s146, 0
      %s149 = sadd.s32 %s148, 1
      %s150 = scalar_select %p147, %s148, %s149
      %p153 = pneg %p147
      %p154 = scmp.eq.s32.totalorder %s23, 1
      %p155 = por %p153, %p154
      %p156 = scmp.ne.s32.totalorder %s148, %s151
      %p157 = scmp.eq.s32.totalorder %s23, 0
      %p158 = por %p156, %p157
      %p159 = scmp.ne.s32.totalorder %s148, %s151
      %p160 = scmp.eq.s32.totalorder %s28, 1
      %p161 = por %p159, %p160
      %p162 = scmp.ne.s32.totalorder %s151, %s152
      %p163 = scmp.eq.s32.totalorder %s28, 0
      %p164 = por %p162, %p163
      %p165 = scmp.ne.s32.totalorder %s151, %s152
      %p166 = scmp.eq.s32.totalorder %s29, 1
      %p167 = por %p165, %p166
      %p169 = scmp.ne.s32.totalorder %s152, %s168
      %p170 = scmp.eq.s32.totalorder %s29, 0
      %p171 = por %p169, %p170
      %p172 = scmp.le.s32.totalorder 1, %s23
      %p173 = scmp.lt.s32.totalorder %s23, 3
      %p174 = pnand %p172, %p173
      %p175 = pneg %p174
      // Predicated region
      $region9: #{tpu_custom_call.1} parent=5 // pred_check
        _
      $region10: #{tpu_custom_call.1} parent=5 // pred_check_branch
        %177 = sbr.rel (%p174) target = $region12
      $region11: #{tpu_custom_call.1} parent=5 // pred_region
        %s178 = ssub.s32 %s23, 1
        // Predicated region
        $region13: #{tpu_custom_call.1} parent=11 // pred_check
          %p179 = pneg %p96
        $region14: #{tpu_custom_call.1} parent=11 // pred_check_branch
          %181 = sbr.rel (%p179) target = $region16
        $region15: #{tpu_custom_call.1} parent=11 // pred_region
          %s183 = ssub.s32 2048, 2048
          %184 = vsyncadd [#allocation7], %s183
          %s185 = sshll.u32 [#allocation6], 4
          %s186 = int_to_ptr.vmem [resolvable:$true] %s185
          %191 = dma.hbm_to_vmem [thread:$0]  %s4, 2048, %s186, [#allocation7], 128, 128, 8
        $region16: #{tpu_custom_call.1} parent=11 // pred_fallthru
          _
        // Predicated region
        $region17: #{tpu_custom_call.1} parent=11 // pred_check
          %p192 = pneg %p117
        $region18: #{tpu_custom_call.1} parent=11 // pred_check_branch
          %194 = sbr.rel (%p192) target = $region20
        $region19: #{tpu_custom_call.1} parent=11 // pred_region
          _
        $region20: #{tpu_custom_call.1} parent=11 // pred_fallthru
          _
        // Predicated region
        $region21: #{tpu_custom_call.1} parent=11 // pred_check
          %p195 = pneg %p138
        $region22: #{tpu_custom_call.1} parent=11 // pred_check_branch
          %197 = sbr.rel (%p195) target = $region24
        $region23: #{tpu_custom_call.1} parent=11 // pred_region
          _
        $region24: #{tpu_custom_call.1} parent=11 // pred_fallthru
          _
      $region12: #{tpu_custom_call.1} parent=5 // pred_fallthru
        _
      %p198 = scmp.lt.s32.totalorder %s23, 2
      // Predicated region
      $region25: #{tpu_custom_call.1} parent=5 // pred_check
        %p199 = pneg %p198
      $region26: #{tpu_custom_call.1} parent=5 // pred_check_branch
        %201 = sbr.rel (%p199) target = $region28
      $region27: #{tpu_custom_call.1} parent=5 // pred_region
        // Predicated region
        $region29: #{tpu_custom_call.1} parent=27 // pred_check
          %p202 = pneg %p43
        $region30: #{tpu_custom_call.1} parent=27 // pred_check_branch
          %204 = sbr.rel (%p202) target = $region32
        $region31: #{tpu_custom_call.1} parent=27 // pred_region
          %p205 = scmp.lt.s32.totalorder %s23, 1
          %s206 = scalar_select %p205, %s23, 1
          %s207 = smul.addr %s206, 8
          %s208 = scalar_lea.vmem %s2, %s207
        $region32: #{tpu_custom_call.1} parent=27 // pred_fallthru
          _
        // Predicated region
        $region33: #{tpu_custom_call.1} parent=27 // pred_check
          %p209 = pneg %p69
        $region34: #{tpu_custom_call.1} parent=27 // pred_check_branch
          %211 = sbr.rel (%p209) target = $region36
        $region35: #{tpu_custom_call.1} parent=27 // pred_region
          %p212 = scmp.lt.s32.totalorder %s23, 1
          %s213 = scalar_select %p212, %s23, 1
          %s214 = smul.addr %s213, 8
          %s215 = scalar_lea.vmem %s3, %s214
        $region36: #{tpu_custom_call.1} parent=27 // pred_fallthru
          _
      $region28: #{tpu_custom_call.1} parent=5 // pred_fallthru
        _
      %p216 = scmp.le.s32.totalorder 1, %s23
      %p217 = scmp.lt.s32.totalorder %s23, 3
      %p218 = pnand %p216, %p217
      %p219 = pneg %p218
      // Predicated region
      $region37: #{tpu_custom_call.1} parent=5 // pred_check
        _
      $region38: #{tpu_custom_call.1} parent=5 // pred_check_branch
        %221 = sbr.rel (%p218) target = $region40
      $region39: #{tpu_custom_call.1} parent=5 // pred_region
        %s222 = ssub.s32 %s23, 1
        // Predicated region
        $region41: #{tpu_custom_call.1} parent=39 // pred_check
          %p223 = pneg %p96
        $region42: #{tpu_custom_call.1} parent=39 // pred_check_branch
          %225 = sbr.rel (%p223) target = $region44
        $region43: #{tpu_custom_call.1} parent=39 // pred_region
          %226 = dma.done [#allocation7], 2048
        $region44: #{tpu_custom_call.1} parent=39 // pred_fallthru
          _
        %p227 = scmp.lt.s32.totalorder %s28, 1
        %s228 = scalar_select %p227, %s28, 1
        %s229 = smul.addr %s228, 8
        %s230 = scalar_lea.vmem %s2, %s229
        %p231 = pneg %p49
        %p232 = pneg %p46
        %p233 = scmp.lt.s32.totalorder %s28, 1
        %s234 = scalar_select %p233, %s28, 1
        %s235 = smul.addr %s234, 8
        %s236 = scalar_lea.vmem %s3, %s235
        %p237 = pneg %p75
        %p238 = pneg %p72
        %p239 = pneg %p96
        %p240 = pneg %p93
        %p241 = pneg %p117
        %p242 = pneg %p114
        %p243 = pneg %p138
        %p244 = pneg %p135
        %p245 = pneg %p164
        %p246 = pneg %p161
        %s247 = sand.u32 %s151, 1
        %s248 = scalar_lea.sflag [#allocation8], %s247
        %s249 = sand.u32 %s151, 1
        %s250 = smul.addr %s249, 8
        %s251 = scalar_lea.vmem [#allocation9], %s250
        %p252 = scmp.lt.s32.totalorder %s28, 1
        %s253 = scalar_select %p252, %s28, 1
        %s254 = smul.addr %s253, 8
        %s255 = scalar_lea.vmem %s2, %s254
        %p256 = scmp.lt.s32.totalorder %s28, 1
        %s257 = scalar_select %p256, %s28, 1
        %s258 = smul.addr %s257, 8
        %s259 = scalar_lea.vmem %s3, %s258
        %p260 = scmp.eq.s32.totalorder %s28, 0
        // Predicated region
        $region45: #{tpu_custom_call.1} parent=39 // pred_check
          %p261 = pneg %p260
        $region46: #{tpu_custom_call.1} parent=39 // pred_check_branch
          %263 = sbr.rel (%p261) target = $region48
        $region47: #{tpu_custom_call.1} parent=39 // pred_region
          %s264 = sld [smem:[#allocation5]]
          %s265 = smul.addr %s264, 16
          %s266 = scalar_lea.hbm %s1, %s265
          // Predicated region
          $region49: #{tpu_custom_call.1} parent=47 // pred_check
            _
          $region50: #{tpu_custom_call.1} parent=47 // pred_check_branch
            %268 = sbr.rel target = $region52
          $region51: #{tpu_custom_call.1} parent=47 // pred_region
            %269 = sst [smem:[#allocation12]] [#allocation11]
            %270 = sst [smem:[#allocation13]] [#allocation10]
          $region52: #{tpu_custom_call.1} parent=47 // pred_fallthru
            _
          %272 = shalt.err (0)
          %s274 = sshll.u32 [#allocation2], 4
          %s275 = int_to_ptr.vmem [resolvable:$true] %s274
          %277 = dma.hbm_to_vmem [thread:$0]  %s266, 16, %s275, [#allocation3]
          %s278 = sadd.s32 0, 1
          %s279 = sld [smem:[#allocation5 + %s278]]
          %s280 = smul.addr %s279, 16
          %s281 = scalar_lea.hbm %s1, %s280
          %s282 = scalar_lea.vmem [#allocation2], 1
          // Predicated region
          $region53: #{tpu_custom_call.1} parent=47 // pred_check
            _
          $region54: #{tpu_custom_call.1} parent=47 // pred_check_branch
            %284 = sbr.rel target = $region56
          $region55: #{tpu_custom_call.1} parent=47 // pred_region
            %285 = sst [smem:[#allocation12]] [#allocation15]
            %286 = sst [smem:[#allocation13]] [#allocation14]
          $region56: #{tpu_custom_call.1} parent=47 // pred_fallthru
            _
          %288 = shalt.err (0)
          %s290 = sshll.u32 %s282, 4
          %s291 = int_to_ptr.vmem [resolvable:$true] %s290
          %293 = dma.hbm_to_vmem [thread:$0]  %s281, 16, %s291, [#allocation3]
          %s294 = sadd.s32 0, 2
          %s295 = sld [smem:[#allocation5 + %s294]]
          %s296 = smul.addr %s295, 16
          %s297 = scalar_lea.hbm %s1, %s296
          %s298 = scalar_lea.vmem [#allocation2], 2
          // Predicated region
          $region57: #{tpu_custom_call.1} parent=47 // pred_check
            _
          $region58: #{tpu_custom_call.1} parent=47 // pred_check_branch
            %300 = sbr.rel target = $region60
          $region59: #{tpu_custom_call.1} parent=47 // pred_region
            %301 = sst [smem:[#allocation12]] [#allocation17]
            %302 = sst [smem:[#allocation13]] [#allocation16]
          $region60: #{tpu_custom_call.1} parent=47 // pred_fallthru
            _
          %304 = shalt.err (0)
          %s306 = sshll.u32 %s298, 4
          %s307 = int_to_ptr.vmem [resolvable:$true] %s306
          %309 = dma.hbm_to_vmem [thread:$0]  %s297, 16, %s307, [#allocation3]
          %s310 = sadd.s32 0, 3
          %s311 = sld [smem:[#allocation5 + %s310]]
          %s312 = smul.addr %s311, 16
          %s313 = scalar_lea.hbm %s1, %s312
          %s314 = scalar_lea.vmem [#allocation2], 3
          // Predicated region
          $region61: #{tpu_custom_call.1} parent=47 // pred_check
            _
          $region62: #{tpu_custom_call.1} parent=47 // pred_check_branch
            %316 = sbr.rel target = $region64
          $region63: #{tpu_custom_call.1} parent=47 // pred_region
            %317 = sst [smem:[#allocation12]] [#allocation19]
            %318 = sst [smem:[#allocation13]] [#allocation18]
          $region64: #{tpu_custom_call.1} parent=47 // pred_fallthru
            _
          %320 = shalt.err (0)
          %s322 = sshll.u32 %s314, 4
          %s323 = int_to_ptr.vmem [resolvable:$true] %s322
          %325 = dma.hbm_to_vmem [thread:$0]  %s313, 16, %s323, [#allocation3]
          %s326 = sadd.s32 0, 4
          %s327 = sld [smem:[#allocation5 + %s326]]
          %s328 = smul.addr %s327, 16
          %s329 = scalar_lea.hbm %s1, %s328
          %s330 = scalar_lea.vmem [#allocation2], 4
          // Predicated region
          $region65: #{tpu_custom_call.1} parent=47 // pred_check
            _
          $region66: #{tpu_custom_call.1} parent=47 // pred_check_branch
            %332 = sbr.rel target = $region68
          $region67: #{tpu_custom_call.1} parent=47 // pred_region
            %333 = sst [smem:[#allocation12]] [#allocation21]
            %334 = sst [smem:[#allocation13]] [#allocation20]
          $region68: #{tpu_custom_call.1} parent=47 // pred_fallthru
            _
          %336 = shalt.err (0)
          %s338 = sshll.u32 %s330, 4
          %s339 = int_to_ptr.vmem [resolvable:$true] %s338
          %341 = dma.hbm_to_vmem [thread:$0]  %s329, 16, %s339, [#allocation3]
          %s342 = sadd.s32 0, 5
          %s343 = sld [smem:[#allocation5 + %s342]]
          %s344 = smul.addr %s343, 16
          %s345 = scalar_lea.hbm %s1, %s344
          %s346 = scalar_lea.vmem [#allocation2], 5
          // Predicated region
          $region69: #{tpu_custom_call.1} parent=47 // pred_check
            _
          $region70: #{tpu_custom_call.1} parent=47 // pred_check_branch
            %348 = sbr.rel target = $region72
          $region71: #{tpu_custom_call.1} parent=47 // pred_region
            %349 = sst [smem:[#allocation12]] [#allocation23]
            %350 = sst [smem:[#allocation13]] [#allocation22]
          $region72: #{tpu_custom_call.1} parent=47 // pred_fallthru
            _
          %352 = shalt.err (0)
          %s354 = sshll.u32 %s346, 4
          %s355 = int_to_ptr.vmem [resolvable:$true] %s354
          %357 = dma.hbm_to_vmem [thread:$0]  %s345, 16, %s355, [#allocation3]
          %s358 = sadd.s32 0, 6
          %s359 = sld [smem:[#allocation5 + %s358]]
          %s360 = smul.addr %s359, 16
          %s361 = scalar_lea.hbm %s1, %s360
          %s362 = scalar_lea.vmem [#allocation2], 6
          // Predicated region
          $region73: #{tpu_custom_call.1} parent=47 // pred_check
            _
          $region74: #{tpu_custom_call.1} parent=47 // pred_check_branch
            %364 = sbr.rel target = $region76
          $region75: #{tpu_custom_call.1} parent=47 // pred_region
            %365 = sst [smem:[#allocation12]] [#allocation25]
            %366 = sst [smem:[#allocation13]] [#allocation24]
          $region76: #{tpu_custom_call.1} parent=47 // pred_fallthru
            _
          %368 = shalt.err (0)
          %s370 = sshll.u32 %s362, 4
          %s371 = int_to_ptr.vmem [resolvable:$true] %s370
          %373 = dma.hbm_to_vmem [thread:$0]  %s361, 16, %s371, [#allocation3]
          %s374 = sadd.s32 0, 7
          %s375 = sld [smem:[#allocation5 + %s374]]
          %s376 = smul.addr %s375, 16
          %s377 = scalar_lea.hbm %s1, %s376
          %s378 = scalar_lea.vmem [#allocation2], 7
          // Predicated region
          $region77: #{tpu_custom_call.1} parent=47 // pred_check
            _
          $region78: #{tpu_custom_call.1} parent=47 // pred_check_branch
            %380 = sbr.rel target = $region80
          $region79: #{tpu_custom_call.1} parent=47 // pred_region
            %381 = sst [smem:[#allocation12]] [#allocation27]
            %382 = sst [smem:[#allocation13]] [#allocation26]
          $region80: #{tpu_custom_call.1} parent=47 // pred_fallthru
            _
          %384 = shalt.err (0)
          %s386 = sshll.u32 %s378, 4
          %s387 = int_to_ptr.vmem [resolvable:$true] %s386
          %389 = dma.hbm_to_vmem [thread:$0]  %s377, 16, %s387, [#allocation3]
        $region48: #{tpu_custom_call.1} parent=39 // pred_fallthru
          _
        %s390 = sadd.s32 %s28, 1
        %p391 = scmp.lt.s32.totalorder %s390, 2
        // Predicated region
        $region81: #{tpu_custom_call.1} parent=39 // pred_check
          %p392 = pneg %p391
        $region82: #{tpu_custom_call.1} parent=39 // pred_check_branch
          %394 = sbr.rel (%p392) target = $region84
        $region83: #{tpu_custom_call.1} parent=39 // pred_region
          %p395 = scmp.lt.s32.totalorder %s390, 0
          %s396 = ssub.s32 0, %s390
          %s397 = scalar_select %p395, %s396, %s390
          %s398 = sand.u32 %s397, 1
          %s399 = ssub.s32 0, %s398
          %s400 = scalar_select %p395, %s399, %s398
          %p401 = scmp.ne.s32.totalorder %s400, 0
          %p402 = scmp.lt.s32.totalorder %s400, 0
          %p403 = pnand %p402, %p401
          %p404 = pneg %p403
          %s405 = sadd.s32 %s400, 2
          %s406 = scalar_select %p404, %s405, %s400
          %s407 = smul.u32 %s390, 8
          %s408 = sld [smem:[#allocation5 + %s407]]
          %s409 = smul.addr %s408, 16
          %s410 = scalar_lea.hbm %s1, %s409
          %s411 = smul.u32 %s406, 8
          %s412 = scalar_lea.vmem [#allocation2], %s411
          %s413 = scalar_lea.sflag [#allocation3], %s406
          // Predicated region
          $region85: #{tpu_custom_call.1} parent=83 // pred_check
            _
          $region86: #{tpu_custom_call.1} parent=83 // pred_check_branch
            %415 = sbr.rel target = $region88
          $region87: #{tpu_custom_call.1} parent=83 // pred_region
            %416 = sst [smem:[#allocation12]] [#allocation29]
            %417 = sst [smem:[#allocation13]] [#allocation28]
          $region88: #{tpu_custom_call.1} parent=83 // pred_fallthru
            _
          %419 = shalt.err (0)
          %s421 = sshll.u32 %s412, 4
          %s422 = int_to_ptr.vmem [resolvable:$true] %s421
          %424 = dma.hbm_to_vmem [thread:$0]  %s410, 16, %s422, %s413
          %s425 = sadd.s32 %s407, 1
          %s426 = sld [smem:[#allocation5 + %s425]]
          %s427 = smul.addr %s426, 16
          %s428 = scalar_lea.hbm %s1, %s427
          %s429 = sadd.s32 1, %s411
          %s430 = scalar_lea.vmem [#allocation2], %s429
          // Predicated region
          $region89: #{tpu_custom_call.1} parent=83 // pred_check
            _
          $region90: #{tpu_custom_call.1} parent=83 // pred_check_branch
            %432 = sbr.rel target = $region92
          $region91: #{tpu_custom_call.1} parent=83 // pred_region
            %433 = sst [smem:[#allocation12]] [#allocation31]
            %434 = sst [smem:[#allocation13]] [#allocation30]
          $region92: #{tpu_custom_call.1} parent=83 // pred_fallthru
            _
          %436 = shalt.err (0)
          %s438 = sshll.u32 %s430, 4
          %s439 = int_to_ptr.vmem [resolvable:$true] %s438
          %441 = dma.hbm_to_vmem [thread:$0]  %s428, 16, %s439, %s413
          %s442 = sadd.s32 %s407, 2
          %s443 = sld [smem:[#allocation5 + %s442]]
          %s444 = smul.addr %s443, 16
          %s445 = scalar_lea.hbm %s1, %s444
          %s446 = sadd.s32 2, %s411
          %s447 = scalar_lea.vmem [#allocation2], %s446
          // Predicated region
          $region93: #{tpu_custom_call.1} parent=83 // pred_check
            _
          $region94: #{tpu_custom_call.1} parent=83 // pred_check_branch
            %449 = sbr.rel target = $region96
          $region95: #{tpu_custom_call.1} parent=83 // pred_region
            %450 = sst [smem:[#allocation12]] [#allocation33]
            %451 = sst [smem:[#allocation13]] [#allocation32]
          $region96: #{tpu_custom_call.1} parent=83 // pred_fallthru
            _
          %453 = shalt.err (0)
          %s455 = sshll.u32 %s447, 4
          %s456 = int_to_ptr.vmem [resolvable:$true] %s455
          %458 = dma.hbm_to_vmem [thread:$0]  %s445, 16, %s456, %s413
          %s459 = sadd.s32 %s407, 3
          %s460 = sld [smem:[#allocation5 + %s459]]
          %s461 = smul.addr %s460, 16
          %s462 = scalar_lea.hbm %s1, %s461
          %s463 = sadd.s32 3, %s411
          %s464 = scalar_lea.vmem [#allocation2], %s463
          // Predicated region
          $region97: #{tpu_custom_call.1} parent=83 // pred_check
            _
          $region98: #{tpu_custom_call.1} parent=83 // pred_check_branch
            %466 = sbr.rel target = $region100
          $region99: #{tpu_custom_call.1} parent=83 // pred_region
            %467 = sst [smem:[#allocation12]] [#allocation35]
            %468 = sst [smem:[#allocation13]] [#allocation34]
          $region100: #{tpu_custom_call.1} parent=83 // pred_fallthru
            _
          %470 = shalt.err (0)
          %s472 = sshll.u32 %s464, 4
          %s473 = int_to_ptr.vmem [resolvable:$true] %s472
          %475 = dma.hbm_to_vmem [thread:$0]  %s462, 16, %s473, %s413
          %s476 = sadd.s32 %s407, 4
          %s477 = sld [smem:[#allocation5 + %s476]]
          %s478 = smul.addr %s477, 16
          %s479 = scalar_lea.hbm %s1, %s478
          %s480 = sadd.s32 4, %s411
          %s481 = scalar_lea.vmem [#allocation2], %s480
          // Predicated region
          $region101: #{tpu_custom_call.1} parent=83 // pred_check
            _
          $region102: #{tpu_custom_call.1} parent=83 // pred_check_branch
            %483 = sbr.rel target = $region104
          $region103: #{tpu_custom_call.1} parent=83 // pred_region
            %484 = sst [smem:[#allocation12]] [#allocation37]
            %485 = sst [smem:[#allocation13]] [#allocation36]
          $region104: #{tpu_custom_call.1} parent=83 // pred_fallthru
            _
          %487 = shalt.err (0)
          %s489 = sshll.u32 %s481, 4
          %s490 = int_to_ptr.vmem [resolvable:$true] %s489
          %492 = dma.hbm_to_vmem [thread:$0]  %s479, 16, %s490, %s413
          %s493 = sadd.s32 %s407, 5
          %s494 = sld [smem:[#allocation5 + %s493]]
          %s495 = smul.addr %s494, 16
          %s496 = scalar_lea.hbm %s1, %s495
          %s497 = sadd.s32 5, %s411
          %s498 = scalar_lea.vmem [#allocation2], %s497
          // Predicated region
          $region105: #{tpu_custom_call.1} parent=83 // pred_check
            _
          $region106: #{tpu_custom_call.1} parent=83 // pred_check_branch
            %500 = sbr.rel target = $region108
          $region107: #{tpu_custom_call.1} parent=83 // pred_region
            %501 = sst [smem:[#allocation12]] [#allocation39]
            %502 = sst [smem:[#allocation13]] [#allocation38]
          $region108: #{tpu_custom_call.1} parent=83 // pred_fallthru
            _
          %504 = shalt.err (0)
          %s506 = sshll.u32 %s498, 4
          %s507 = int_to_ptr.vmem [resolvable:$true] %s506
          %509 = dma.hbm_to_vmem [thread:$0]  %s496, 16, %s507, %s413
          %s510 = sadd.s32 %s407, 6
          %s511 = sld [smem:[#allocation5 + %s510]]
          %s512 = smul.addr %s511, 16
          %s513 = scalar_lea.hbm %s1, %s512
          %s514 = sadd.s32 6, %s411
          %s515 = scalar_lea.vmem [#allocation2], %s514
          // Predicated region
          $region109: #{tpu_custom_call.1} parent=83 // pred_check
            _
          $region110: #{tpu_custom_call.1} parent=83 // pred_check_branch
            %517 = sbr.rel target = $region112
          $region111: #{tpu_custom_call.1} parent=83 // pred_region
            %518 = sst [smem:[#allocation12]] [#allocation41]
            %519 = sst [smem:[#allocation13]] [#allocation40]
          $region112: #{tpu_custom_call.1} parent=83 // pred_fallthru
            _
          %521 = shalt.err (0)
          %s523 = sshll.u32 %s515, 4
          %s524 = int_to_ptr.vmem [resolvable:$true] %s523
          %526 = dma.hbm_to_vmem [thread:$0]  %s513, 16, %s524, %s413
          %s527 = sadd.s32 %s407, 7
          %s528 = sld [smem:[#allocation5 + %s527]]
          %s529 = smul.addr %s528, 16
          %s530 = scalar_lea.hbm %s1, %s529
          %s531 = sadd.s32 7, %s411
          %s532 = scalar_lea.vmem [#allocation2], %s531
          // Predicated region
          $region113: #{tpu_custom_call.1} parent=83 // pred_check
            _
          $region114: #{tpu_custom_call.1} parent=83 // pred_check_branch
            %534 = sbr.rel target = $region116
          $region115: #{tpu_custom_call.1} parent=83 // pred_region
            %535 = sst [smem:[#allocation12]] [#allocation43]
            %536 = sst [smem:[#allocation13]] [#allocation42]
          $region116: #{tpu_custom_call.1} parent=83 // pred_fallthru
            _
          %538 = shalt.err (0)
          %s540 = sshll.u32 %s532, 4
          %s541 = int_to_ptr.vmem [resolvable:$true] %s540
          %543 = dma.hbm_to_vmem [thread:$0]  %s530, 16, %s541, %s413
        $region84: #{tpu_custom_call.1} parent=39 // pred_fallthru
          _
        %p544 = scmp.lt.s32.totalorder %s28, 0
        %s545 = ssub.s32 0, %s28
        %s546 = scalar_select %p544, %s545, %s28
        %s547 = sand.u32 %s546, 1
        %s548 = ssub.s32 0, %s547
        %s549 = scalar_select %p544, %s548, %s547
        %p550 = scmp.ne.s32.totalorder %s549, 0
        %p551 = scmp.lt.s32.totalorder %s549, 0
        %p552 = pnand %p551, %p550
        %p553 = pneg %p552
        %s554 = sadd.s32 %s549, 2
        %s555 = scalar_select %p553, %s554, %s549
        %s556 = smul.u32 %s555, 8
        %s557 = scalar_lea.vmem [#allocation2], %s556
        %s558 = scalar_lea.sflag [#allocation3], %s555
        %s559 = smul.u32 8, 1
        %s560 = sshll.u32 %s559, 4
        %561 = dma.done %s558, %s560
        %v562 = vld [vmem:[%s557] sm:$0xff]
        %v563 = vld [vmem:[%s255] sm:$0xff]
        %v564 = vlaneseq
        %v565 = vand.u32 %v564, 127
        %566 = vset.pattern.permute.xlu0 0
        %567 = vperm.xlu0 %566, %v563
        %v568 = vpop.permute.xlu0 %567
        %vm569 = vcmp.eq.s32.totalorder %v568, %v565
        %v570 = vsel %vm569, 1, 0
        %v571 = vcvt.s32.f32 %v570
        %v572 = vld [vmem:[#allocation6] sm:$0xff]
        %v573 = vld [vmem:[#allocation6 + $0x8] sm:$0xff]
        %v574 = vld [vmem:[#allocation6 + $0x10] sm:$0xff]
        %v575 = vld [vmem:[#allocation6 + $0x18] sm:$0xff]
        %v576 = vld [vmem:[#allocation6 + $0x20] sm:$0xff]
        %v577 = vld [vmem:[#allocation6 + $0x28] sm:$0xff]
        %v578 = vld [vmem:[#allocation6 + $0x30] sm:$0xff]
        %v579 = vld [vmem:[#allocation6 + $0x38] sm:$0xff]
        %v580 = vld [vmem:[#allocation6 + $0x40] sm:$0xff]
        %v581 = vld [vmem:[#allocation6 + $0x48] sm:$0xff]
        %v582 = vld [vmem:[#allocation6 + $0x50] sm:$0xff]
        %v583 = vld [vmem:[#allocation6 + $0x58] sm:$0xff]
        %v584 = vld [vmem:[#allocation6 + $0x60] sm:$0xff]
        %v585 = vld [vmem:[#allocation6 + $0x68] sm:$0xff]
        %v586 = vld [vmem:[#allocation6 + $0x70] sm:$0xff]
        %v587 = vld [vmem:[#allocation6 + $0x78] sm:$0xff]
        %588 = vmatprep.subr.mxu0 0.0
        %589 = vmatpush1.msra.mxu0 %v587
        %590 = vmatprep.subr.mxu0 0.0
        %591 = vmatpush1.msra.mxu0 %v586
        %592 = vmatprep.subr.mxu0 0.0
        %593 = vmatpush1.msra.mxu0 %v585
        %594 = vmatprep.subr.mxu0 0.0
        %595 = vmatpush1.msra.mxu0 %v584
        %596 = vmatprep.subr.mxu0 0.0
        %597 = vmatpush1.msra.mxu0 %v583
        %598 = vmatprep.subr.mxu0 0.0
        %599 = vmatpush1.msra.mxu0 %v582
        %600 = vmatprep.subr.mxu0 0.0
        %601 = vmatpush1.msra.mxu0 %v581
        %602 = vmatprep.subr.mxu0 0.0
        %603 = vmatpush1.msra.mxu0 %v580
        %604 = vmatprep.subr.mxu0 0.0
        %605 = vmatpush1.msra.mxu0 %v579
        %606 = vmatprep.subr.mxu0 0.0
        %607 = vmatpush1.msra.mxu0 %v578
        %608 = vmatprep.subr.mxu0 0.0
        %609 = vmatpush1.msra.mxu0 %v577
        %610 = vmatprep.subr.mxu0 0.0
        %611 = vmatpush1.msra.mxu0 %v576
        %612 = vmatprep.subr.mxu0 0.0
        %613 = vmatpush1.msra.mxu0 %v575
        %614 = vmatprep.subr.mxu0 0.0
        %615 = vmatpush1.msra.mxu0 %v574
        %616 = vmatprep.subr.mxu0 0.0
        %617 = vmatpush1.msra.mxu0 %v573
        %618 = vmatprep.subr.mxu0 0.0
        %619 = vmatpush1.msra.mxu0 %v572
        %620 = vmatprep.subr.mxu0 0.0
        %621 = vmatpush2.msra.mxu0 0.0
        %622 = vmatprep.subr.mxu0 0.0
        %623 = vmatpush2.msra.mxu0 0.0
        %624 = vmatprep.subr.mxu0 0.0
        %625 = vmatpush2.msra.mxu0 0.0
        %626 = vmatprep.subr.mxu0 0.0
        %627 = vmatpush2.msra.mxu0 0.0
        %628 = vmatprep.subr.mxu0 0.0
        %629 = vmatpush2.msra.mxu0 0.0
        %630 = vmatprep.subr.mxu0 0.0
        %631 = vmatpush2.msra.mxu0 0.0
        %632 = vmatprep.subr.mxu0 0.0
        %633 = vmatpush2.msra.mxu0 0.0
        %634 = vmatprep.subr.mxu0 0.0
        %635 = vmatpush2.msra.mxu0 0.0
        %636 = vmatprep.subr.mxu0 0.0
        %637 = vmatpush2.msra.mxu0 0.0
        %638 = vmatprep.subr.mxu0 0.0
        %639 = vmatpush2.msra.mxu0 0.0
        %640 = vmatprep.subr.mxu0 0.0
        %641 = vmatpush2.msra.mxu0 0.0
        %642 = vmatprep.subr.mxu0 0.0
        %643 = vmatpush2.msra.mxu0 0.0
        %644 = vmatprep.subr.mxu0 0.0
        %645 = vmatpush2.msra.mxu0 0.0
        %646 = vmatprep.subr.mxu0 0.0
        %647 = vmatpush2.msra.mxu0 0.0
        %648 = vmatprep.subr.mxu0 0.0
        %649 = vmatpush2.msra.mxu0 0.0
        %650 = vmatprep.subr.mxu0 0.0
        %651 = vmatpush2.msra.mxu0 0.0
        %652 = vmatprep.mubr.f32.mxu0 0.0
        %653 = vmatmul.mubr.f32.gmra.mxu0 %v571
        %v654 = vpop.f32.mrf.mxu0
        %v655 = vadd.f32 0.0, %v654
        %v656 = vpop.f32.mrf.mxu0
        %657 = vdwg.mxu0
        %v658 = vadd.f32 %v562, %v655
        %v659 = vld [vmem:[%s259] sm:$0xff]
        %660 = vset.pattern.permute.xlu0 0
        %661 = vperm.xlu0 %660, %v659
        %v662 = vpop.permute.xlu0 %661
        %vm663 = vcmp.eq.s32.totalorder %v662, %v565
        %v664 = vsel %vm663, 1, 0
        %v665 = vcvt.s32.f32 %v664
        %v666 = vld [vmem:[%s5] sm:$0xff]
        %vm667 = vcmask 64512
        %v669 = vsel %vm667, %v665, 0
        %671 = vmatprep.subr.mxu0 0.0
        %672 = vmatpush1.msra.mxu0 0.0
        %673 = vmatprep.subr.mxu0 0.0
        %674 = vmatpush1.msra.mxu0 0.0
        %675 = vmatprep.subr.mxu0 0.0
        %676 = vmatpush1.msra.mxu0 0.0
        %677 = vmatprep.subr.mxu0 0.0
        %678 = vmatpush1.msra.mxu0 0.0
        %679 = vmatprep.subr.mxu0 0.0
        %680 = vmatpush1.msra.mxu0 0.0
        %681 = vmatprep.subr.mxu0 0.0
        %682 = vmatpush1.msra.mxu0 0.0
        %683 = vmatprep.subr.mxu0 0.0
        %684 = vmatpush1.msra.mxu0 0.0
        %685 = vmatprep.subr.mxu0 0.0
        %686 = vmatpush1.msra.mxu0 0.0
        %687 = vmatprep.subr.mxu0 0.0
        %688 = vmatpush1.msra.mxu0 0.0
        %689 = vmatprep.subr.mxu0 0.0
        %690 = vmatpush1.msra.mxu0 0.0
        %691 = vmatprep.subr.mxu0 0.0
        %692 = vmatpush1.msra.mxu0 0.0
        %693 = vmatprep.subr.mxu0 0.0
        %694 = vmatpush1.msra.mxu0 0.0
        %695 = vmatprep.subr.mxu0 0.0
        %696 = vmatpush1.msra.mxu0 0.0
        %697 = vmatprep.subr.mxu0 0.0
        %698 = vmatpush1.msra.mxu0 0.0
        %699 = vmatprep.subr.mxu0 0.0
        %700 = vmatpush1.msra.mxu0 0.0
        %701 = vmatprep.subr.mxu0 0.0
        %702 = vmatpush1.msra.mxu0 %v666
        %703 = vmatprep.subr.mxu0 0.0
        %704 = vmatpush2.msra.mxu0 0.0
        %705 = vmatprep.subr.mxu0 0.0
        %706 = vmatpush2.msra.mxu0 0.0
        %707 = vmatprep.subr.mxu0 0.0
        %708 = vmatpush2.msra.mxu0 0.0
        %709 = vmatprep.subr.mxu0 0.0
        %710 = vmatpush2.msra.mxu0 0.0
        %711 = vmatprep.subr.mxu0 0.0
        %712 = vmatpush2.msra.mxu0 0.0
        %713 = vmatprep.subr.mxu0 0.0
        %714 = vmatpush2.msra.mxu0 0.0
        %715 = vmatprep.subr.mxu0 0.0
        %716 = vmatpush2.msra.mxu0 0.0
        %717 = vmatprep.subr.mxu0 0.0
        %718 = vmatpush2.msra.mxu0 0.0
        %719 = vmatprep.subr.mxu0 0.0
        %720 = vmatpush2.msra.mxu0 0.0
        %721 = vmatprep.subr.mxu0 0.0
        %722 = vmatpush2.msra.mxu0 0.0
        %723 = vmatprep.subr.mxu0 0.0
        %724 = vmatpush2.msra.mxu0 0.0
        %725 = vmatprep.subr.mxu0 0.0
        %726 = vmatpush2.msra.mxu0 0.0
        %727 = vmatprep.subr.mxu0 0.0
        %728 = vmatpush2.msra.mxu0 0.0
        %729 = vmatprep.subr.mxu0 0.0
        %730 = vmatpush2.msra.mxu0 0.0
        %731 = vmatprep.subr.mxu0 0.0
        %732 = vmatpush2.msra.mxu0 0.0
        %733 = vmatprep.subr.mxu0 0.0
        %734 = vmatpush2.msra.mxu0 0.0
        %735 = vmatprep.mubr.f32.mxu0 0.0
        %736 = vmatmul.mubr.f32.gmra.mxu0 %v669
        %v737 = vpop.f32.mrf.mxu0
        %v738 = vadd.f32 0.0, %v737
        %v739 = vpop.f32.mrf.mxu0
        %740 = vdwg.mxu0
        %v741 = vadd.f32 %v658, %v738
        %742 = vadd.xlane.f32.xlu0 %v741
        %v743 = vpop.xlane.xlu0 %742
        %v744 = vrcp.pop 128.0
        %v745 = vmul.f32 %v743, %v744
        %v746 = vsub.f32 %v741, %v745
        %v747 = vmul.f32 %v746, %v746
        %748 = vadd.xlane.f32.xlu0 %v747
        %v749 = vpop.xlane.xlu0 %748
        %v750 = vmul.f32 %v749, %v744
        %v751 = vadd.f32 %v750, 1e-12
        %v752 = vrsqrt.pop %v751
        %v753 = vmul.f32 %v746, %v752
        %v754 = vld [vmem:[%s6] sm:$0x1]
        %v755 = vlaneseq
        %v756 = vshrl.u32 %v755, 7
        %v757 = vsub.s32 0, %v756
        %v758 = vrot.slane %v754, %v757
        %v759 = vmul.f32 %v753, %v758
        %v760 = vld [vmem:[%s6 + $0x1] sm:$0x1]
        %v761 = vlaneseq
        %v762 = vshrl.u32 %v761, 7
        %v763 = vsub.s32 0, %v762
        %v764 = vrot.slane %v760, %v763
        %v765 = vadd.f32 %v759, %v764
        %766 = vst [vmem:[%s251] sm:$0xff] %v765
        %s767 = sand.u32 %s151, 1
        %s768 = scalar_lea.sflag [#allocation8], %s767
        %s769 = sand.u32 %s151, 1
        %s770 = smul.addr %s769, 8
        %s771 = scalar_lea.vmem [#allocation9], %s770
        // Predicated region
        $region117: #{tpu_custom_call.1} parent=39 // pred_check
          %p772 = pneg %p161
        $region118: #{tpu_custom_call.1} parent=39 // pred_check_branch
          %774 = sbr.rel (%p772) target = $region120
        $region119: #{tpu_custom_call.1} parent=39 // pred_region
          %s776 = ssub.s32 128, 128
          %777 = vsyncadd %s768, %s776
          %s778 = smul.addr %s28, 128
          %s779 = scalar_lea.hbm %s7, %s778
          %s781 = sshll.u32 %s771, 4
          %s782 = int_to_ptr.vmem [resolvable:$true] %s781
          %784 = dma.vmem_to_hbm [thread:$0]  %s782, 128, %s779, %s768
        $region120: #{tpu_custom_call.1} parent=39 // pred_fallthru
          _
      $region40: #{tpu_custom_call.1} parent=5 // pred_fallthru
        _
      %p785 = scmp.le.s32.totalorder 2, %s23
      // Predicated region
      $region121: #{tpu_custom_call.1} parent=5 // pred_check
        %p786 = pneg %p785
      $region122: #{tpu_custom_call.1} parent=5 // pred_check_branch
        %788 = sbr.rel (%p786) target = $region124
      $region123: #{tpu_custom_call.1} parent=5 // pred_region
        %s789 = ssub.s32 %s23, 2
        // Predicated region
        $region125: #{tpu_custom_call.1} parent=123 // pred_check
          %p790 = pneg %p167
        $region126: #{tpu_custom_call.1} parent=123 // pred_check_branch
          %792 = sbr.rel (%p790) target = $region128
        $region127: #{tpu_custom_call.1} parent=123 // pred_region
          %s793 = sand.u32 %s152, 1
          %s794 = scalar_lea.sflag [#allocation8], %s793
          %s795 = sand.u32 %s152, 1
          %s796 = smul.addr %s795, 8
          %s797 = scalar_lea.vmem [#allocation9], %s796
          %798 = dma.done %s794, 128
        $region128: #{tpu_custom_call.1} parent=123 // pred_fallthru
          _
      $region124: #{tpu_custom_call.1} parent=5 // pred_fallthru
        _
    $region6: #{tpu_custom_call.1} parent=1 // loop_footer
      %s27 = sadd.s32 1, %s23
    $region7: #{tpu_custom_call.1} parent=1 // loop_footer_branch
      %22 = sbr.rel target = $region3
    $region8: #{tpu_custom_call.1} parent=1 // loop_exit
      _
    %799 = vsyncpa [#allocation7], 1
    %s800 = scalar_lea.sflag [#allocation7], 1
    %801 = vsyncpa %s800, 1
    %802 = vsyncpa [#allocation8], 1
    %s803 = scalar_lea.sflag [#allocation8], 1
    %804 = vsyncpa %s803, 1
  %805 = vsyncmov [#allocation3]
  %s806 = vpop.sfrf %805
  %p807 = scmp.eq.s32.totalorder %s806, 0
  %p808 = pneg %p807
  %810 = shalt.err (%p808)
  %s811 = scalar_lea.sflag [#allocation3], 1
  %812 = vsyncmov %s811
  %s813 = vpop.sfrf %812
  %p814 = scmp.eq.s32.totalorder %s813, 0
  %p815 = pneg %p814
  %817 = shalt.err (%p815)

</llo_original>
